<compile_context>
chip_gen: v5e
topology: v5e:2x2
jax: 0.10.0
libtpu: 0.0.40
codegen_flags: <defaults>
</compile_context>

<pallas_src>
import math

import jax
import jax.numpy as jnp
import numpy as np
from jax.experimental import pallas as pl
from jax.experimental.pallas import tpu as pltpu


def make_kernel(n_layers, T, N, F, H, K):
    def kernel(*refs):
        x_ref = refs[0]                               # (T, N, F) time-major input
        layer_refs = refs[1:1 + 3 * n_layers]         # per layer: wih (in,4H), whh (H,4H), b (1,4H)
        wp_ref = refs[1 + 3 * n_layers]               # (K, N, H) == pred.weight.reshape(K, N, H)
        bp_ref = refs[2 + 3 * n_layers]               # (K, 1)
        out_ref = refs[3 + 3 * n_layers]              # (K, 1)

        # Load every weight exactly once, outside the unrolled loops.
        wih = [layer_refs[3 * l][...] for l in range(n_layers)]
        whh = [layer_refs[3 * l + 1][...] for l in range(n_layers)]
        b = [layer_refs[3 * l + 2][...] for l in range(n_layers)]

        # h/c state stays in registers; (n_layers, N, H) is tiny.
        h = [jnp.zeros((N, H), jnp.float32) for _ in range(n_layers)]
        c = [jnp.zeros((N, H), jnp.float32) for _ in range(n_layers)]

        for t in range(T):                            # fully unrolled time loop
            inp = x_ref[t]                            # (N, F)
            for l in range(n_layers):                 # stacked layers
                # One fused gate matmul pair: (N, 4H) with 4H = 128 lanes.
                gates = (jnp.dot(inp, wih[l], preferred_element_type=jnp.float32)
                         + jnp.dot(h[l], whh[l], preferred_element_type=jnp.float32)
                         + b[l])
                # PyTorch gate order: i, f, g, o (static lane slices).
                i_g = jax.nn.sigmoid(gates[:, 0 * H:1 * H])
                f_g = jax.nn.sigmoid(gates[:, 1 * H:2 * H])
                g_g = jnp.tanh(gates[:, 2 * H:3 * H])
                o_g = jax.nn.sigmoid(gates[:, 3 * H:4 * H])
                c[l] = f_g * c[l] + i_g * g_g
                h[l] = o_g * jnp.tanh(c[l])
                inp = h[l]                            # feed next stacked layer

        # pred Linear over the n-major/h-minor flatten of h_n[-1]:
        # out[k] = sum_{n,h} hl[n,h] * pred.weight[k, n*H + h] + pred.bias[k]
        hl = h[n_layers - 1]                          # (N, H)
        tmp = wp_ref[...] * hl[None, :, :]            # (K, N, H) broadcast multiply
        s1 = jnp.sum(tmp, axis=2)                     # (K, N)
        out_ref[...] = jnp.sum(s1, axis=1, keepdims=True) + bp_ref[...]   # (K, 1)

    return kernel


def trans_forward(xb, layer_params, wp_t, bp_col):
    """xb: (N, T, F) float32 (batch_first, as in torch). Returns (price_pred (K,), kg_loss)."""
    N, T, F = xb.shape
    n_layers = len(layer_params)
    H = layer_params[0][1].shape[0]                   # whh is (H, 4H)
    K = bp_col.shape[0]

    x_tm = jnp.transpose(xb, (1, 0, 2)).astype(jnp.float32)   # time-major (T, N, F)

    flat_inputs = [x_tm]
    for (wih, whh, b) in layer_params:
        flat_inputs += [wih, whh, b]
    flat_inputs += [wp_t, bp_col]

    in_specs = [pl.BlockSpec(memory_space=pltpu.MemorySpace.VMEM)
                for _ in flat_inputs]

    out = pl.pallas_call(
        make_kernel(n_layers, T, N, F, H, K),
        out_shape=jax.ShapeDtypeStruct((K, 1), jnp.float32),
        in_specs=in_specs,
        out_specs=pl.BlockSpec(memory_space=pltpu.MemorySpace.VMEM),
    )(*flat_inputs)

    kg_loss = jnp.float32(0.0)   # USE_KG / USE_GRAPH disabled in this config
    return out[:, 0], kg_loss


def init_params(key, F, H, n_layers, N, K):
    """Deterministic parameter init mirroring torch defaults (uniform(-1/sqrt(fan), +)),
    packed in the fused-gate layout: Wih (in, 4H), Whh (H, 4H), b (1, 4H), gate order i,f,g,o."""
    k_lstm = 1.0 / math.sqrt(H)
    layer_params = []
    for l in range(n_layers):
        in_l = F if l == 0 else H
        key, k1, k2, k3, k4 = jax.random.split(key, 5)
        wih = jax.random.uniform(k1, (in_l, 4 * H), jnp.float32, -k_lstm, k_lstm)
        whh = jax.random.uniform(k2, (H, 4 * H), jnp.float32, -k_lstm, k_lstm)
        b = (jax.random.uniform(k3, (1, 4 * H), jnp.float32, -k_lstm, k_lstm)
             + jax.random.uniform(k4, (1, 4 * H), jnp.float32, -k_lstm, k_lstm))  # b_ih + b_hh
        layer_params.append((wih, whh, b))
    in_f = H * N
    k_pred = 1.0 / math.sqrt(in_f)
    key, k5, k6 = jax.random.split(key, 3)
    wp = jax.random.uniform(k5, (K, in_f), jnp.float32, -k_pred, k_pred)   # torch pred.weight
    bp = jax.random.uniform(k6, (K,), jnp.float32, -k_pred, k_pred)        # torch pred.bias
    wp_t = wp.reshape(K, N, H)   # matches x.view(-1) flatten order (n-major, h-minor)
    bp_col = bp.reshape(K, 1)
    return layer_params, wp_t, bp_col


def ref_forward(xb, layer_params, wp_t, bp_col):
    """Pure-JAX reference of the same forward path (lax.scan LSTM + pred Linear)."""
    N, T, F = xb.shape
    seq = jnp.transpose(xb, (1, 0, 2)).astype(jnp.float32)   # (T, N, F)
    h_last = None
    for (wih, whh, b) in layer_params:
        H = whh.shape[0]

        def step(carry, x_t, wih=wih, whh=whh, b=b, H=H):
            h, c = carry
            gates = x_t @ wih + h @ whh + b          # (N, 4H)
            i_g = jax.nn.sigmoid(gates[:, 0 * H:1 * H])
            f_g = jax.nn.sigmoid(gates[:, 1 * H:2 * H])
            g_g = jnp.tanh(gates[:, 2 * H:3 * H])
            o_g = jax.nn.sigmoid(gates[:, 3 * H:4 * H])
            c = f_g * c + i_g * g_g
            h = o_g * jnp.tanh(c)
            return (h, c), h

        init = (jnp.zeros((N, H), jnp.float32), jnp.zeros((N, H), jnp.float32))
        (h_last, _), seq = jax.lax.scan(step, init, seq)
    H = layer_params[-1][1].shape[0]
    K = bp_col.shape[0]
    return wp_t.reshape(K, N * H) @ h_last.reshape(N * H) + bp_col[:, 0]


if __name__ == "__main__":
    # Small shapes consistent with Trans(..., T, D_MODEL, ..., ENC_LAYERS, ..., NUM_NODES):
    # the LSTM batch must equal NUM_NODES for pred's flattened input to line up.
    NUM_NODES = 8
    T = 8
    F = 5          # nn.LSTM(input_size=5, ...)
    D_MODEL = 32   # 4*H = 128 -> one lane-dense gate tile
    ENC_LAYERS = 2

    key = jax.random.PRNGKey(0)
    key, kx = jax.random.split(key)
    xb = jax.random.normal(kx, (NUM_NODES, T, F), jnp.float32)

    layer_params, wp_t, bp_col = init_params(key, F, D_MODEL, ENC_LAYERS, NUM_NODES, NUM_NODES)

    price_pred, kg_loss = trans_forward(xb, layer_params, wp_t, bp_col)
    price_pred = jax.block_until_ready(price_pred)

    ref = ref_forward(xb, layer_params, wp_t, bp_col)
    np.testing.assert_allclose(np.asarray(price_pred), np.asarray(ref),
                               rtol=2e-4, atol=2e-4)
    print("KERNEL_OK")
</pallas_src>

<mosaic_0001>
module attributes {stable_mosaic.version = 11 : i64} {
  func.func @kernel(%arg0: memref<8x8x5xf32, #tpu.memory_space<vmem>>, %arg1: memref<5x128xf32, #tpu.memory_space<vmem>>, %arg2: memref<32x128xf32, #tpu.memory_space<vmem>>, %arg3: memref<1x128xf32, #tpu.memory_space<vmem>>, %arg4: memref<32x128xf32, #tpu.memory_space<vmem>>, %arg5: memref<32x128xf32, #tpu.memory_space<vmem>>, %arg6: memref<1x128xf32, #tpu.memory_space<vmem>>, %arg7: memref<8x8x32xf32, #tpu.memory_space<vmem>>, %arg8: memref<8x1xf32, #tpu.memory_space<vmem>>, %arg9: memref<8x1xf32, #tpu.memory_space<vmem>>) attributes {dimension_semantics = [], scalar_prefetch = 0 : i64, scratch_operands = 0 : i64, tpu.core_type = #tpu.core_type<tc>} {
    %c0 = arith.constant 0 : index
    %c0_0 = arith.constant 0 : index
    %0 = vector.load %arg1[%c0, %c0_0] : memref<5x128xf32, #tpu.memory_space<vmem>>, vector<5x128xf32>
    %c0_1 = arith.constant 0 : index
    %c0_2 = arith.constant 0 : index
    %1 = vector.load %arg4[%c0_1, %c0_2] : memref<32x128xf32, #tpu.memory_space<vmem>>, vector<32x128xf32>
    %c0_3 = arith.constant 0 : index
    %c0_4 = arith.constant 0 : index
    %2 = vector.load %arg2[%c0_3, %c0_4] : memref<32x128xf32, #tpu.memory_space<vmem>>, vector<32x128xf32>
    %c0_5 = arith.constant 0 : index
    %c0_6 = arith.constant 0 : index
    %3 = vector.load %arg5[%c0_5, %c0_6] : memref<32x128xf32, #tpu.memory_space<vmem>>, vector<32x128xf32>
    %c0_7 = arith.constant 0 : index
    %c0_8 = arith.constant 0 : index
    %4 = vector.load %arg3[%c0_7, %c0_8] : memref<1x128xf32, #tpu.memory_space<vmem>>, vector<1x128xf32>
    %c0_9 = arith.constant 0 : index
    %c0_10 = arith.constant 0 : index
    %5 = vector.load %arg6[%c0_9, %c0_10] : memref<1x128xf32, #tpu.memory_space<vmem>>, vector<1x128xf32>
    %cst = arith.constant 0.000000e+00 : f32
    %6 = vector.broadcast %cst : f32 to vector<8x32xf32>
    %cst_11 = arith.constant 0.000000e+00 : f32
    %7 = vector.broadcast %cst_11 : f32 to vector<8x32xf32>
    %cst_12 = arith.constant 0.000000e+00 : f32
    %8 = vector.broadcast %cst_12 : f32 to vector<8x32xf32>
    %cst_13 = arith.constant 0.000000e+00 : f32
    %9 = vector.broadcast %cst_13 : f32 to vector<8x32xf32>
    %c0_14 = arith.constant 0 : index
    %c0_15 = arith.constant 0 : index
    %c0_16 = arith.constant 0 : index
    %10 = vector.load %arg0[%c0_14, %c0_15, %c0_16] : memref<8x8x5xf32, #tpu.memory_space<vmem>>, vector<1x8x5xf32>
    %11 = vector.shape_cast %10 : vector<1x8x5xf32> to vector<8x5xf32>
    %cst_17 = arith.constant dense<0.000000e+00> : vector<8x128xf32>
    %12 = tpu.matmul %11, %0, %cst_17 {dimension_numbers = #tpu.dot_dimension_numbers<[1], [0], [0], [1], [0, 0, 1, 1], [], []>} : vector<8x5xf32>, vector<5x128xf32>, vector<8x128xf32> -> vector<8x128xf32>
    %cst_18 = arith.constant dense<0.000000e+00> : vector<8x128xf32>
    %13 = tpu.matmul %6, %2, %cst_18 {dimension_numbers = #tpu.dot_dimension_numbers<[1], [0], [0], [1], [0, 0, 1, 1], [], []>} : vector<8x32xf32>, vector<32x128xf32>, vector<8x128xf32> -> vector<8x128xf32>
    %14 = arith.addf %12, %13 : vector<8x128xf32>
    %15 = vector.broadcast %4 : vector<1x128xf32> to vector<8x128xf32>
    %16 = arith.addf %14, %15 : vector<8x128xf32>
    %17 = vector.extract_strided_slice %16 {offsets = [0, 0], sizes = [8, 32], strides = [1, 1]} : vector<8x128xf32> to vector<8x32xf32>
    %18 = arith.negf %17 : vector<8x32xf32>
    %19 = math.exp %18 : vector<8x32xf32>
    %cst_19 = arith.constant 1.000000e+00 : f32
    %20 = vector.broadcast %cst_19 : f32 to vector<8x32xf32>
    %21 = arith.addf %20, %19 : vector<8x32xf32>
    %22 = arith.divf %20, %21 : vector<8x32xf32>
    %23 = vector.extract_strided_slice %16 {offsets = [0, 32], sizes = [8, 32], strides = [1, 1]} : vector<8x128xf32> to vector<8x32xf32>
    %24 = arith.negf %23 : vector<8x32xf32>
    %25 = math.exp %24 : vector<8x32xf32>
    %cst_20 = arith.constant 1.000000e+00 : f32
    %26 = vector.broadcast %cst_20 : f32 to vector<8x32xf32>
    %27 = arith.addf %26, %25 : vector<8x32xf32>
    %28 = arith.divf %26, %27 : vector<8x32xf32>
    %29 = vector.extract_strided_slice %16 {offsets = [0, 64], sizes = [8, 32], strides = [1, 1]} : vector<8x128xf32> to vector<8x32xf32>
    %30 = math.tanh %29 : vector<8x32xf32>
    %31 = vector.extract_strided_slice %16 {offsets = [0, 96], sizes = [8, 32], strides = [1, 1]} : vector<8x128xf32> to vector<8x32xf32>
    %32 = arith.negf %31 : vector<8x32xf32>
    %33 = math.exp %32 : vector<8x32xf32>
    %cst_21 = arith.constant 1.000000e+00 : f32
    %34 = vector.broadcast %cst_21 : f32 to vector<8x32xf32>
    %35 = arith.addf %34, %33 : vector<8x32xf32>
    %36 = arith.divf %34, %35 : vector<8x32xf32>
    %37 = arith.mulf %28, %8 : vector<8x32xf32>
    %38 = arith.mulf %22, %30 : vector<8x32xf32>
    %39 = arith.addf %37, %38 : vector<8x32xf32>
    %40 = math.tanh %39 : vector<8x32xf32>
    %41 = arith.mulf %36, %40 : vector<8x32xf32>
    %cst_22 = arith.constant dense<0.000000e+00> : vector<8x128xf32>
    %42 = tpu.matmul %41, %1, %cst_22 {dimension_numbers = #tpu.dot_dimension_numbers<[1], [0], [0], [1], [0, 0, 1, 1], [], []>} : vector<8x32xf32>, vector<32x128xf32>, vector<8x128xf32> -> vector<8x128xf32>
    %cst_23 = arith.constant dense<0.000000e+00> : vector<8x128xf32>
    %43 = tpu.matmul %7, %3, %cst_23 {dimension_numbers = #tpu.dot_dimension_numbers<[1], [0], [0], [1], [0, 0, 1, 1], [], []>} : vector<8x32xf32>, vector<32x128xf32>, vector<8x128xf32> -> vector<8x128xf32>
    %44 = arith.addf %42, %43 : vector<8x128xf32>
    %45 = vector.broadcast %5 : vector<1x128xf32> to vector<8x128xf32>
    %46 = arith.addf %44, %45 : vector<8x128xf32>
    %47 = vector.extract_strided_slice %46 {offsets = [0, 0], sizes = [8, 32], strides = [1, 1]} : vector<8x128xf32> to vector<8x32xf32>
    %48 = arith.negf %47 : vector<8x32xf32>
    %49 = math.exp %48 : vector<8x32xf32>
    %cst_24 = arith.constant 1.000000e+00 : f32
    %50 = vector.broadcast %cst_24 : f32 to vector<8x32xf32>
    %51 = arith.addf %50, %49 : vector<8x32xf32>
    %52 = arith.divf %50, %51 : vector<8x32xf32>
    %53 = vector.extract_strided_slice %46 {offsets = [0, 32], sizes = [8, 32], strides = [1, 1]} : vector<8x128xf32> to vector<8x32xf32>
    %54 = arith.negf %53 : vector<8x32xf32>
    %55 = math.exp %54 : vector<8x32xf32>
    %cst_25 = arith.constant 1.000000e+00 : f32
    %56 = vector.broadcast %cst_25 : f32 to vector<8x32xf32>
    %57 = arith.addf %56, %55 : vector<8x32xf32>
    %58 = arith.divf %56, %57 : vector<8x32xf32>
    %59 = vector.extract_strided_slice %46 {offsets = [0, 64], sizes = [8, 32], strides = [1, 1]} : vector<8x128xf32> to vector<8x32xf32>
    %60 = math.tanh %59 : vector<8x32xf32>
    %61 = vector.extract_strided_slice %46 {offsets = [0, 96], sizes = [8, 32], strides = [1, 1]} : vector<8x128xf32> to vector<8x32xf32>
    %62 = arith.negf %61 : vector<8x32xf32>
    %63 = math.exp %62 : vector<8x32xf32>
    %cst_26 = arith.constant 1.000000e+00 : f32
    %64 = vector.broadcast %cst_26 : f32 to vector<8x32xf32>
    %65 = arith.addf %64, %63 : vector<8x32xf32>
    %66 = arith.divf %64, %65 : vector<8x32xf32>
    %67 = arith.mulf %58, %9 : vector<8x32xf32>
    %68 = arith.mulf %52, %60 : vector<8x32xf32>
    %69 = arith.addf %67, %68 : vector<8x32xf32>
    %70 = math.tanh %69 : vector<8x32xf32>
    %71 = arith.mulf %66, %70 : vector<8x32xf32>
    %c1 = arith.constant 1 : index
    %c0_27 = arith.constant 0 : index
    %c0_28 = arith.constant 0 : index
    %72 = vector.load %arg0[%c1, %c0_27, %c0_28] : memref<8x8x5xf32, #tpu.memory_space<vmem>>, vector<1x8x5xf32>
    %73 = vector.shape_cast %72 : vector<1x8x5xf32> to vector<8x5xf32>
    %cst_29 = arith.constant dense<0.000000e+00> : vector<8x128xf32>
    %74 = tpu.matmul %73, %0, %cst_29 {dimension_numbers = #tpu.dot_dimension_numbers<[1], [0], [0], [1], [0, 0, 1, 1], [], []>} : vector<8x5xf32>, vector<5x128xf32>, vector<8x128xf32> -> vector<8x128xf32>
    %cst_30 = arith.constant dense<0.000000e+00> : vector<8x128xf32>
    %75 = tpu.matmul %41, %2, %cst_30 {dimension_numbers = #tpu.dot_dimension_numbers<[1], [0], [0], [1], [0, 0, 1, 1], [], []>} : vector<8x32xf32>, vector<32x128xf32>, vector<8x128xf32> -> vector<8x128xf32>
    %76 = arith.addf %74, %75 : vector<8x128xf32>
    %77 = vector.broadcast %4 : vector<1x128xf32> to vector<8x128xf32>
    %78 = arith.addf %76, %77 : vector<8x128xf32>
    %79 = vector.extract_strided_slice %78 {offsets = [0, 0], sizes = [8, 32], strides = [1, 1]} : vector<8x128xf32> to vector<8x32xf32>
    %80 = arith.negf %79 : vector<8x32xf32>
    %81 = math.exp %80 : vector<8x32xf32>
    %cst_31 = arith.constant 1.000000e+00 : f32
    %82 = vector.broadcast %cst_31 : f32 to vector<8x32xf32>
    %83 = arith.addf %82, %81 : vector<8x32xf32>
    %84 = arith.divf %82, %83 : vector<8x32xf32>
    %85 = vector.extract_strided_slice %78 {offsets = [0, 32], sizes = [8, 32], strides = [1, 1]} : vector<8x128xf32> to vector<8x32xf32>
    %86 = arith.negf %85 : vector<8x32xf32>
    %87 = math.exp %86 : vector<8x32xf32>
    %cst_32 = arith.constant 1.000000e+00 : f32
    %88 = vector.broadcast %cst_32 : f32 to vector<8x32xf32>
    %89 = arith.addf %88, %87 : vector<8x32xf32>
    %90 = arith.divf %88, %89 : vector<8x32xf32>
    %91 = vector.extract_strided_slice %78 {offsets = [0, 64], sizes = [8, 32], strides = [1, 1]} : vector<8x128xf32> to vector<8x32xf32>
    %92 = math.tanh %91 : vector<8x32xf32>
    %93 = vector.extract_strided_slice %78 {offsets = [0, 96], sizes = [8, 32], strides = [1, 1]} : vector<8x128xf32> to vector<8x32xf32>
    %94 = arith.negf %93 : vector<8x32xf32>
    %95 = math.exp %94 : vector<8x32xf32>
    %cst_33 = arith.constant 1.000000e+00 : f32
    %96 = vector.broadcast %cst_33 : f32 to vector<8x32xf32>
    %97 = arith.addf %96, %95 : vector<8x32xf32>
    %98 = arith.divf %96, %97 : vector<8x32xf32>
    %99 = arith.mulf %90, %39 : vector<8x32xf32>
    %100 = arith.mulf %84, %92 : vector<8x32xf32>
    %101 = arith.addf %99, %100 : vector<8x32xf32>
    %102 = math.tanh %101 : vector<8x32xf32>
    %103 = arith.mulf %98, %102 : vector<8x32xf32>
    %cst_34 = arith.constant dense<0.000000e+00> : vector<8x128xf32>
    %104 = tpu.matmul %103, %1, %cst_34 {dimension_numbers = #tpu.dot_dimension_numbers<[1], [0], [0], [1], [0, 0, 1, 1], [], []>} : vector<8x32xf32>, vector<32x128xf32>, vector<8x128xf32> -> vector<8x128xf32>
    %cst_35 = arith.constant dense<0.000000e+00> : vector<8x128xf32>
    %105 = tpu.matmul %71, %3, %cst_35 {dimension_numbers = #tpu.dot_dimension_numbers<[1], [0], [0], [1], [0, 0, 1, 1], [], []>} : vector<8x32xf32>, vector<32x128xf32>, vector<8x128xf32> -> vector<8x128xf32>
    %106 = arith.addf %104, %105 : vector<8x128xf32>
    %107 = vector.broadcast %5 : vector<1x128xf32> to vector<8x128xf32>
    %108 = arith.addf %106, %107 : vector<8x128xf32>
    %109 = vector.extract_strided_slice %108 {offsets = [0, 0], sizes = [8, 32], strides = [1, 1]} : vector<8x128xf32> to vector<8x32xf32>
    %110 = arith.negf %109 : vector<8x32xf32>
    %111 = math.exp %110 : vector<8x32xf32>
    %cst_36 = arith.constant 1.000000e+00 : f32
    %112 = vector.broadcast %cst_36 : f32 to vector<8x32xf32>
    %113 = arith.addf %112, %111 : vector<8x32xf32>
    %114 = arith.divf %112, %113 : vector<8x32xf32>
    %115 = vector.extract_strided_slice %108 {offsets = [0, 32], sizes = [8, 32], strides = [1, 1]} : vector<8x128xf32> to vector<8x32xf32>
    %116 = arith.negf %115 : vector<8x32xf32>
    %117 = math.exp %116 : vector<8x32xf32>
    %cst_37 = arith.constant 1.000000e+00 : f32
    %118 = vector.broadcast %cst_37 : f32 to vector<8x32xf32>
    %119 = arith.addf %118, %117 : vector<8x32xf32>
    %120 = arith.divf %118, %119 : vector<8x32xf32>
    %121 = vector.extract_strided_slice %108 {offsets = [0, 64], sizes = [8, 32], strides = [1, 1]} : vector<8x128xf32> to vector<8x32xf32>
    %122 = math.tanh %121 : vector<8x32xf32>
    %123 = vector.extract_strided_slice %108 {offsets = [0, 96], sizes = [8, 32], strides = [1, 1]} : vector<8x128xf32> to vector<8x32xf32>
    %124 = arith.negf %123 : vector<8x32xf32>
    %125 = math.exp %124 : vector<8x32xf32>
    %cst_38 = arith.constant 1.000000e+00 : f32
    %126 = vector.broadcast %cst_38 : f32 to vector<8x32xf32>
    %127 = arith.addf %126, %125 : vector<8x32xf32>
    %128 = arith.divf %126, %127 : vector<8x32xf32>
    %129 = arith.mulf %120, %69 : vector<8x32xf32>
    %130 = arith.mulf %114, %122 : vector<8x32xf32>
    %131 = arith.addf %129, %130 : vector<8x32xf32>
    %132 = math.tanh %131 : vector<8x32xf32>
    %133 = arith.mulf %128, %132 : vector<8x32xf32>
    %c2 = arith.constant 2 : index
    %c0_39 = arith.constant 0 : index
    %c0_40 = arith.constant 0 : index
    %134 = vector.load %arg0[%c2, %c0_39, %c0_40] : memref<8x8x5xf32, #tpu.memory_space<vmem>>, vector<1x8x5xf32>
    %135 = vector.shape_cast %134 : vector<1x8x5xf32> to vector<8x5xf32>
    %cst_41 = arith.constant dense<0.000000e+00> : vector<8x128xf32>
    %136 = tpu.matmul %135, %0, %cst_41 {dimension_numbers = #tpu.dot_dimension_numbers<[1], [0], [0], [1], [0, 0, 1, 1], [], []>} : vector<8x5xf32>, vector<5x128xf32>, vector<8x128xf32> -> vector<8x128xf32>
    %cst_42 = arith.constant dense<0.000000e+00> : vector<8x128xf32>
    %137 = tpu.matmul %103, %2, %cst_42 {dimension_numbers = #tpu.dot_dimension_numbers<[1], [0], [0], [1], [0, 0, 1, 1], [], []>} : vector<8x32xf32>, vector<32x128xf32>, vector<8x128xf32> -> vector<8x128xf32>
    %138 = arith.addf %136, %137 : vector<8x128xf32>
    %139 = vector.broadcast %4 : vector<1x128xf32> to vector<8x128xf32>
    %140 = arith.addf %138, %139 : vector<8x128xf32>
    %141 = vector.extract_strided_slice %140 {offsets = [0, 0], sizes = [8, 32], strides = [1, 1]} : vector<8x128xf32> to vector<8x32xf32>
    %142 = arith.negf %141 : vector<8x32xf32>
    %143 = math.exp %142 : vector<8x32xf32>
    %cst_43 = arith.constant 1.000000e+00 : f32
    %144 = vector.broadcast %cst_43 : f32 to vector<8x32xf32>
    %145 = arith.addf %144, %143 : vector<8x32xf32>
    %146 = arith.divf %144, %145 : vector<8x32xf32>
    %147 = vector.extract_strided_slice %140 {offsets = [0, 32], sizes = [8, 32], strides = [1, 1]} : vector<8x128xf32> to vector<8x32xf32>
    %148 = arith.negf %147 : vector<8x32xf32>
    %149 = math.exp %148 : vector<8x32xf32>
    %cst_44 = arith.constant 1.000000e+00 : f32
    %150 = vector.broadcast %cst_44 : f32 to vector<8x32xf32>
    %151 = arith.addf %150, %149 : vector<8x32xf32>
    %152 = arith.divf %150, %151 : vector<8x32xf32>
    %153 = vector.extract_strided_slice %140 {offsets = [0, 64], sizes = [8, 32], strides = [1, 1]} : vector<8x128xf32> to vector<8x32xf32>
    %154 = math.tanh %153 : vector<8x32xf32>
    %155 = vector.extract_strided_slice %140 {offsets = [0, 96], sizes = [8, 32], strides = [1, 1]} : vector<8x128xf32> to vector<8x32xf32>
    %156 = arith.negf %155 : vector<8x32xf32>
    %157 = math.exp %156 : vector<8x32xf32>
    %cst_45 = arith.constant 1.000000e+00 : f32
    %158 = vector.broadcast %cst_45 : f32 to vector<8x32xf32>
    %159 = arith.addf %158, %157 : vector<8x32xf32>
    %160 = arith.divf %158, %159 : vector<8x32xf32>
    %161 = arith.mulf %152, %101 : vector<8x32xf32>
    %162 = arith.mulf %146, %154 : vector<8x32xf32>
    %163 = arith.addf %161, %162 : vector<8x32xf32>
    %164 = math.tanh %163 : vector<8x32xf32>
    %165 = arith.mulf %160, %164 : vector<8x32xf32>
    %cst_46 = arith.constant dense<0.000000e+00> : vector<8x128xf32>
    %166 = tpu.matmul %165, %1, %cst_46 {dimension_numbers = #tpu.dot_dimension_numbers<[1], [0], [0], [1], [0, 0, 1, 1], [], []>} : vector<8x32xf32>, vector<32x128xf32>, vector<8x128xf32> -> vector<8x128xf32>
    %cst_47 = arith.constant dense<0.000000e+00> : vector<8x128xf32>
    %167 = tpu.matmul %133, %3, %cst_47 {dimension_numbers = #tpu.dot_dimension_numbers<[1], [0], [0], [1], [0, 0, 1, 1], [], []>} : vector<8x32xf32>, vector<32x128xf32>, vector<8x128xf32> -> vector<8x128xf32>
    %168 = arith.addf %166, %167 : vector<8x128xf32>
    %169 = vector.broadcast %5 : vector<1x128xf32> to vector<8x128xf32>
    %170 = arith.addf %168, %169 : vector<8x128xf32>
    %171 = vector.extract_strided_slice %170 {offsets = [0, 0], sizes = [8, 32], strides = [1, 1]} : vector<8x128xf32> to vector<8x32xf32>
    %172 = arith.negf %171 : vector<8x32xf32>
    %173 = math.exp %172 : vector<8x32xf32>
    %cst_48 = arith.constant 1.000000e+00 : f32
    %174 = vector.broadcast %cst_48 : f32 to vector<8x32xf32>
    %175 = arith.addf %174, %173 : vector<8x32xf32>
    %176 = arith.divf %174, %175 : vector<8x32xf32>
    %177 = vector.extract_strided_slice %170 {offsets = [0, 32], sizes = [8, 32], strides = [1, 1]} : vector<8x128xf32> to vector<8x32xf32>
    %178 = arith.negf %177 : vector<8x32xf32>
    %179 = math.exp %178 : vector<8x32xf32>
    %cst_49 = arith.constant 1.000000e+00 : f32
    %180 = vector.broadcast %cst_49 : f32 to vector<8x32xf32>
    %181 = arith.addf %180, %179 : vector<8x32xf32>
    %182 = arith.divf %180, %181 : vector<8x32xf32>
    %183 = vector.extract_strided_slice %170 {offsets = [0, 64], sizes = [8, 32], strides = [1, 1]} : vector<8x128xf32> to vector<8x32xf32>
    %184 = math.tanh %183 : vector<8x32xf32>
    %185 = vector.extract_strided_slice %170 {offsets = [0, 96], sizes = [8, 32], strides = [1, 1]} : vector<8x128xf32> to vector<8x32xf32>
    %186 = arith.negf %185 : vector<8x32xf32>
    %187 = math.exp %186 : vector<8x32xf32>
    %cst_50 = arith.constant 1.000000e+00 : f32
    %188 = vector.broadcast %cst_50 : f32 to vector<8x32xf32>
    %189 = arith.addf %188, %187 : vector<8x32xf32>
    %190 = arith.divf %188, %189 : vector<8x32xf32>
    %191 = arith.mulf %182, %131 : vector<8x32xf32>
    %192 = arith.mulf %176, %184 : vector<8x32xf32>
    %193 = arith.addf %191, %192 : vector<8x32xf32>
    %194 = math.tanh %193 : vector<8x32xf32>
    %195 = arith.mulf %190, %194 : vector<8x32xf32>
    %c3 = arith.constant 3 : index
    %c0_51 = arith.constant 0 : index
    %c0_52 = arith.constant 0 : index
    %196 = vector.load %arg0[%c3, %c0_51, %c0_52] : memref<8x8x5xf32, #tpu.memory_space<vmem>>, vector<1x8x5xf32>
    %197 = vector.shape_cast %196 : vector<1x8x5xf32> to vector<8x5xf32>
    %cst_53 = arith.constant dense<0.000000e+00> : vector<8x128xf32>
    %198 = tpu.matmul %197, %0, %cst_53 {dimension_numbers = #tpu.dot_dimension_numbers<[1], [0], [0], [1], [0, 0, 1, 1], [], []>} : vector<8x5xf32>, vector<5x128xf32>, vector<8x128xf32> -> vector<8x128xf32>
    %cst_54 = arith.constant dense<0.000000e+00> : vector<8x128xf32>
    %199 = tpu.matmul %165, %2, %cst_54 {dimension_numbers = #tpu.dot_dimension_numbers<[1], [0], [0], [1], [0, 0, 1, 1], [], []>} : vector<8x32xf32>, vector<32x128xf32>, vector<8x128xf32> -> vector<8x128xf32>
    %200 = arith.addf %198, %199 : vector<8x128xf32>
    %201 = vector.broadcast %4 : vector<1x128xf32> to vector<8x128xf32>
    %202 = arith.addf %200, %201 : vector<8x128xf32>
    %203 = vector.extract_strided_slice %202 {offsets = [0, 0], sizes = [8, 32], strides = [1, 1]} : vector<8x128xf32> to vector<8x32xf32>
    %204 = arith.negf %203 : vector<8x32xf32>
    %205 = math.exp %204 : vector<8x32xf32>
    %cst_55 = arith.constant 1.000000e+00 : f32
    %206 = vector.broadcast %cst_55 : f32 to vector<8x32xf32>
    %207 = arith.addf %206, %205 : vector<8x32xf32>
    %208 = arith.divf %206, %207 : vector<8x32xf32>
    %209 = vector.extract_strided_slice %202 {offsets = [0, 32], sizes = [8, 32], strides = [1, 1]} : vector<8x128xf32> to vector<8x32xf32>
    %210 = arith.negf %209 : vector<8x32xf32>
    %211 = math.exp %210 : vector<8x32xf32>
    %cst_56 = arith.constant 1.000000e+00 : f32
    %212 = vector.broadcast %cst_56 : f32 to vector<8x32xf32>
    %213 = arith.addf %212, %211 : vector<8x32xf32>
    %214 = arith.divf %212, %213 : vector<8x32xf32>
    %215 = vector.extract_strided_slice %202 {offsets = [0, 64], sizes = [8, 32], strides = [1, 1]} : vector<8x128xf32> to vector<8x32xf32>
    %216 = math.tanh %215 : vector<8x32xf32>
    %217 = vector.extract_strided_slice %202 {offsets = [0, 96], sizes = [8, 32], strides = [1, 1]} : vector<8x128xf32> to vector<8x32xf32>
    %218 = arith.negf %217 : vector<8x32xf32>
    %219 = math.exp %218 : vector<8x32xf32>
    %cst_57 = arith.constant 1.000000e+00 : f32
    %220 = vector.broadcast %cst_57 : f32 to vector<8x32xf32>
    %221 = arith.addf %220, %219 : vector<8x32xf32>
    %222 = arith.divf %220, %221 : vector<8x32xf32>
    %223 = arith.mulf %214, %163 : vector<8x32xf32>
    %224 = arith.mulf %208, %216 : vector<8x32xf32>
    %225 = arith.addf %223, %224 : vector<8x32xf32>
    %226 = math.tanh %225 : vector<8x32xf32>
    %227 = arith.mulf %222, %226 : vector<8x32xf32>
    %cst_58 = arith.constant dense<0.000000e+00> : vector<8x128xf32>
    %228 = tpu.matmul %227, %1, %cst_58 {dimension_numbers = #tpu.dot_dimension_numbers<[1], [0], [0], [1], [0, 0, 1, 1], [], []>} : vector<8x32xf32>, vector<32x128xf32>, vector<8x128xf32> -> vector<8x128xf32>
    %cst_59 = arith.constant dense<0.000000e+00> : vector<8x128xf32>
    %229 = tpu.matmul %195, %3, %cst_59 {dimension_numbers = #tpu.dot_dimension_numbers<[1], [0], [0], [1], [0, 0, 1, 1], [], []>} : vector<8x32xf32>, vector<32x128xf32>, vector<8x128xf32> -> vector<8x128xf32>
    %230 = arith.addf %228, %229 : vector<8x128xf32>
    %231 = vector.broadcast %5 : vector<1x128xf32> to vector<8x128xf32>
    %232 = arith.addf %230, %231 : vector<8x128xf32>
    %233 = vector.extract_strided_slice %232 {offsets = [0, 0], sizes = [8, 32], strides = [1, 1]} : vector<8x128xf32> to vector<8x32xf32>
    %234 = arith.negf %233 : vector<8x32xf32>
    %235 = math.exp %234 : vector<8x32xf32>
    %cst_60 = arith.constant 1.000000e+00 : f32
    %236 = vector.broadcast %cst_60 : f32 to vector<8x32xf32>
    %237 = arith.addf %236, %235 : vector<8x32xf32>
    %238 = arith.divf %236, %237 : vector<8x32xf32>
    %239 = vector.extract_strided_slice %232 {offsets = [0, 32], sizes = [8, 32], strides = [1, 1]} : vector<8x128xf32> to vector<8x32xf32>
    %240 = arith.negf %239 : vector<8x32xf32>
    %241 = math.exp %240 : vector<8x32xf32>
    %cst_61 = arith.constant 1.000000e+00 : f32
    %242 = vector.broadcast %cst_61 : f32 to vector<8x32xf32>
    %243 = arith.addf %242, %241 : vector<8x32xf32>
    %244 = arith.divf %242, %243 : vector<8x32xf32>
    %245 = vector.extract_strided_slice %232 {offsets = [0, 64], sizes = [8, 32], strides = [1, 1]} : vector<8x128xf32> to vector<8x32xf32>
    %246 = math.tanh %245 : vector<8x32xf32>
    %247 = vector.extract_strided_slice %232 {offsets = [0, 96], sizes = [8, 32], strides = [1, 1]} : vector<8x128xf32> to vector<8x32xf32>
    %248 = arith.negf %247 : vector<8x32xf32>
    %249 = math.exp %248 : vector<8x32xf32>
    %cst_62 = arith.constant 1.000000e+00 : f32
    %250 = vector.broadcast %cst_62 : f32 to vector<8x32xf32>
    %251 = arith.addf %250, %249 : vector<8x32xf32>
    %252 = arith.divf %250, %251 : vector<8x32xf32>
    %253 = arith.mulf %244, %193 : vector<8x32xf32>
    %254 = arith.mulf %238, %246 : vector<8x32xf32>
    %255 = arith.addf %253, %254 : vector<8x32xf32>
    %256 = math.tanh %255 : vector<8x32xf32>
    %257 = arith.mulf %252, %256 : vector<8x32xf32>
    %c4 = arith.constant 4 : index
    %c0_63 = arith.constant 0 : index
    %c0_64 = arith.constant 0 : index
    %258 = vector.load %arg0[%c4, %c0_63, %c0_64] : memref<8x8x5xf32, #tpu.memory_space<vmem>>, vector<1x8x5xf32>
    %259 = vector.shape_cast %258 : vector<1x8x5xf32> to vector<8x5xf32>
    %cst_65 = arith.constant dense<0.000000e+00> : vector<8x128xf32>
    %260 = tpu.matmul %259, %0, %cst_65 {dimension_numbers = #tpu.dot_dimension_numbers<[1], [0], [0], [1], [0, 0, 1, 1], [], []>} : vector<8x5xf32>, vector<5x128xf32>, vector<8x128xf32> -> vector<8x128xf32>
    %cst_66 = arith.constant dense<0.000000e+00> : vector<8x128xf32>
    %261 = tpu.matmul %227, %2, %cst_66 {dimension_numbers = #tpu.dot_dimension_numbers<[1], [0], [0], [1], [0, 0, 1, 1], [], []>} : vector<8x32xf32>, vector<32x128xf32>, vector<8x128xf32> -> vector<8x128xf32>
    %262 = arith.addf %260, %261 : vector<8x128xf32>
    %263 = vector.broadcast %4 : vector<1x128xf32> to vector<8x128xf32>
    %264 = arith.addf %262, %263 : vector<8x128xf32>
    %265 = vector.extract_strided_slice %264 {offsets = [0, 0], sizes = [8, 32], strides = [1, 1]} : vector<8x128xf32> to vector<8x32xf32>
    %266 = arith.negf %265 : vector<8x32xf32>
    %267 = math.exp %266 : vector<8x32xf32>
    %cst_67 = arith.constant 1.000000e+00 : f32
    %268 = vector.broadcast %cst_67 : f32 to vector<8x32xf32>
    %269 = arith.addf %268, %267 : vector<8x32xf32>
    %270 = arith.divf %268, %269 : vector<8x32xf32>
    %271 = vector.extract_strided_slice %264 {offsets = [0, 32], sizes = [8, 32], strides = [1, 1]} : vector<8x128xf32> to vector<8x32xf32>
    %272 = arith.negf %271 : vector<8x32xf32>
    %273 = math.exp %272 : vector<8x32xf32>
    %cst_68 = arith.constant 1.000000e+00 : f32
    %274 = vector.broadcast %cst_68 : f32 to vector<8x32xf32>
    %275 = arith.addf %274, %273 : vector<8x32xf32>
    %276 = arith.divf %274, %275 : vector<8x32xf32>
    %277 = vector.extract_strided_slice %264 {offsets = [0, 64], sizes = [8, 32], strides = [1, 1]} : vector<8x128xf32> to vector<8x32xf32>
    %278 = math.tanh %277 : vector<8x32xf32>
    %279 = vector.extract_strided_slice %264 {offsets = [0, 96], sizes = [8, 32], strides = [1, 1]} : vector<8x128xf32> to vector<8x32xf32>
    %280 = arith.negf %279 : vector<8x32xf32>
    %281 = math.exp %280 : vector<8x32xf32>
    %cst_69 = arith.constant 1.000000e+00 : f32
    %282 = vector.broadcast %cst_69 : f32 to vector<8x32xf32>
    %283 = arith.addf %282, %281 : vector<8x32xf32>
    %284 = arith.divf %282, %283 : vector<8x32xf32>
    %285 = arith.mulf %276, %225 : vector<8x32xf32>
    %286 = arith.mulf %270, %278 : vector<8x32xf32>
    %287 = arith.addf %285, %286 : vector<8x32xf32>
    %288 = math.tanh %287 : vector<8x32xf32>
    %289 = arith.mulf %284, %288 : vector<8x32xf32>
    %cst_70 = arith.constant dense<0.000000e+00> : vector<8x128xf32>
    %290 = tpu.matmul %289, %1, %cst_70 {dimension_numbers = #tpu.dot_dimension_numbers<[1], [0], [0], [1], [0, 0, 1, 1], [], []>} : vector<8x32xf32>, vector<32x128xf32>, vector<8x128xf32> -> vector<8x128xf32>
    %cst_71 = arith.constant dense<0.000000e+00> : vector<8x128xf32>
    %291 = tpu.matmul %257, %3, %cst_71 {dimension_numbers = #tpu.dot_dimension_numbers<[1], [0], [0], [1], [0, 0, 1, 1], [], []>} : vector<8x32xf32>, vector<32x128xf32>, vector<8x128xf32> -> vector<8x128xf32>
    %292 = arith.addf %290, %291 : vector<8x128xf32>
    %293 = vector.broadcast %5 : vector<1x128xf32> to vector<8x128xf32>
    %294 = arith.addf %292, %293 : vector<8x128xf32>
    %295 = vector.extract_strided_slice %294 {offsets = [0, 0], sizes = [8, 32], strides = [1, 1]} : vector<8x128xf32> to vector<8x32xf32>
    %296 = arith.negf %295 : vector<8x32xf32>
    %297 = math.exp %296 : vector<8x32xf32>
    %cst_72 = arith.constant 1.000000e+00 : f32
    %298 = vector.broadcast %cst_72 : f32 to vector<8x32xf32>
    %299 = arith.addf %298, %297 : vector<8x32xf32>
    %300 = arith.divf %298, %299 : vector<8x32xf32>
    %301 = vector.extract_strided_slice %294 {offsets = [0, 32], sizes = [8, 32], strides = [1, 1]} : vector<8x128xf32> to vector<8x32xf32>
    %302 = arith.negf %301 : vector<8x32xf32>
    %303 = math.exp %302 : vector<8x32xf32>
    %cst_73 = arith.constant 1.000000e+00 : f32
    %304 = vector.broadcast %cst_73 : f32 to vector<8x32xf32>
    %305 = arith.addf %304, %303 : vector<8x32xf32>
    %306 = arith.divf %304, %305 : vector<8x32xf32>
    %307 = vector.extract_strided_slice %294 {offsets = [0, 64], sizes = [8, 32], strides = [1, 1]} : vector<8x128xf32> to vector<8x32xf32>
    %308 = math.tanh %307 : vector<8x32xf32>
    %309 = vector.extract_strided_slice %294 {offsets = [0, 96], sizes = [8, 32], strides = [1, 1]} : vector<8x128xf32> to vector<8x32xf32>
    %310 = arith.negf %309 : vector<8x32xf32>
    %311 = math.exp %310 : vector<8x32xf32>
    %cst_74 = arith.constant 1.000000e+00 : f32
    %312 = vector.broadcast %cst_74 : f32 to vector<8x32xf32>
    %313 = arith.addf %312, %311 : vector<8x32xf32>
    %314 = arith.divf %312, %313 : vector<8x32xf32>
    %315 = arith.mulf %306, %255 : vector<8x32xf32>
    %316 = arith.mulf %300, %308 : vector<8x32xf32>
    %317 = arith.addf %315, %316 : vector<8x32xf32>
    %318 = math.tanh %317 : vector<8x32xf32>
    %319 = arith.mulf %314, %318 : vector<8x32xf32>
    %c5 = arith.constant 5 : index
    %c0_75 = arith.constant 0 : index
    %c0_76 = arith.constant 0 : index
    %320 = vector.load %arg0[%c5, %c0_75, %c0_76] : memref<8x8x5xf32, #tpu.memory_space<vmem>>, vector<1x8x5xf32>
    %321 = vector.shape_cast %320 : vector<1x8x5xf32> to vector<8x5xf32>
    %cst_77 = arith.constant dense<0.000000e+00> : vector<8x128xf32>
    %322 = tpu.matmul %321, %0, %cst_77 {dimension_numbers = #tpu.dot_dimension_numbers<[1], [0], [0], [1], [0, 0, 1, 1], [], []>} : vector<8x5xf32>, vector<5x128xf32>, vector<8x128xf32> -> vector<8x128xf32>
    %cst_78 = arith.constant dense<0.000000e+00> : vector<8x128xf32>
    %323 = tpu.matmul %289, %2, %cst_78 {dimension_numbers = #tpu.dot_dimension_numbers<[1], [0], [0], [1], [0, 0, 1, 1], [], []>} : vector<8x32xf32>, vector<32x128xf32>, vector<8x128xf32> -> vector<8x128xf32>
    %324 = arith.addf %322, %323 : vector<8x128xf32>
    %325 = vector.broadcast %4 : vector<1x128xf32> to vector<8x128xf32>
    %326 = arith.addf %324, %325 : vector<8x128xf32>
    %327 = vector.extract_strided_slice %326 {offsets = [0, 0], sizes = [8, 32], strides = [1, 1]} : vector<8x128xf32> to vector<8x32xf32>
    %328 = arith.negf %327 : vector<8x32xf32>
    %329 = math.exp %328 : vector<8x32xf32>
    %cst_79 = arith.constant 1.000000e+00 : f32
    %330 = vector.broadcast %cst_79 : f32 to vector<8x32xf32>
    %331 = arith.addf %330, %329 : vector<8x32xf32>
    %332 = arith.divf %330, %331 : vector<8x32xf32>
    %333 = vector.extract_strided_slice %326 {offsets = [0, 32], sizes = [8, 32], strides = [1, 1]} : vector<8x128xf32> to vector<8x32xf32>
    %334 = arith.negf %333 : vector<8x32xf32>
    %335 = math.exp %334 : vector<8x32xf32>
    %cst_80 = arith.constant 1.000000e+00 : f32
    %336 = vector.broadcast %cst_80 : f32 to vector<8x32xf32>
    %337 = arith.addf %336, %335 : vector<8x32xf32>
    %338 = arith.divf %336, %337 : vector<8x32xf32>
    %339 = vector.extract_strided_slice %326 {offsets = [0, 64], sizes = [8, 32], strides = [1, 1]} : vector<8x128xf32> to vector<8x32xf32>
    %340 = math.tanh %339 : vector<8x32xf32>
    %341 = vector.extract_strided_slice %326 {offsets = [0, 96], sizes = [8, 32], strides = [1, 1]} : vector<8x128xf32> to vector<8x32xf32>
    %342 = arith.negf %341 : vector<8x32xf32>
    %343 = math.exp %342 : vector<8x32xf32>
    %cst_81 = arith.constant 1.000000e+00 : f32
    %344 = vector.broadcast %cst_81 : f32 to vector<8x32xf32>
    %345 = arith.addf %344, %343 : vector<8x32xf32>
    %346 = arith.divf %344, %345 : vector<8x32xf32>
    %347 = arith.mulf %338, %287 : vector<8x32xf32>
    %348 = arith.mulf %332, %340 : vector<8x32xf32>
    %349 = arith.addf %347, %348 : vector<8x32xf32>
    %350 = math.tanh %349 : vector<8x32xf32>
    %351 = arith.mulf %346, %350 : vector<8x32xf32>
    %cst_82 = arith.constant dense<0.000000e+00> : vector<8x128xf32>
    %352 = tpu.matmul %351, %1, %cst_82 {dimension_numbers = #tpu.dot_dimension_numbers<[1], [0], [0], [1], [0, 0, 1, 1], [], []>} : vector<8x32xf32>, vector<32x128xf32>, vector<8x128xf32> -> vector<8x128xf32>
    %cst_83 = arith.constant dense<0.000000e+00> : vector<8x128xf32>
    %353 = tpu.matmul %319, %3, %cst_83 {dimension_numbers = #tpu.dot_dimension_numbers<[1], [0], [0], [1], [0, 0, 1, 1], [], []>} : vector<8x32xf32>, vector<32x128xf32>, vector<8x128xf32> -> vector<8x128xf32>
    %354 = arith.addf %352, %353 : vector<8x128xf32>
    %355 = vector.broadcast %5 : vector<1x128xf32> to vector<8x128xf32>
    %356 = arith.addf %354, %355 : vector<8x128xf32>
    %357 = vector.extract_strided_slice %356 {offsets = [0, 0], sizes = [8, 32], strides = [1, 1]} : vector<8x128xf32> to vector<8x32xf32>
    %358 = arith.negf %357 : vector<8x32xf32>
    %359 = math.exp %358 : vector<8x32xf32>
    %cst_84 = arith.constant 1.000000e+00 : f32
    %360 = vector.broadcast %cst_84 : f32 to vector<8x32xf32>
    %361 = arith.addf %360, %359 : vector<8x32xf32>
    %362 = arith.divf %360, %361 : vector<8x32xf32>
    %363 = vector.extract_strided_slice %356 {offsets = [0, 32], sizes = [8, 32], strides = [1, 1]} : vector<8x128xf32> to vector<8x32xf32>
    %364 = arith.negf %363 : vector<8x32xf32>
    %365 = math.exp %364 : vector<8x32xf32>
    %cst_85 = arith.constant 1.000000e+00 : f32
    %366 = vector.broadcast %cst_85 : f32 to vector<8x32xf32>
    %367 = arith.addf %366, %365 : vector<8x32xf32>
    %368 = arith.divf %366, %367 : vector<8x32xf32>
    %369 = vector.extract_strided_slice %356 {offsets = [0, 64], sizes = [8, 32], strides = [1, 1]} : vector<8x128xf32> to vector<8x32xf32>
    %370 = math.tanh %369 : vector<8x32xf32>
    %371 = vector.extract_strided_slice %356 {offsets = [0, 96], sizes = [8, 32], strides = [1, 1]} : vector<8x128xf32> to vector<8x32xf32>
    %372 = arith.negf %371 : vector<8x32xf32>
    %373 = math.exp %372 : vector<8x32xf32>
    %cst_86 = arith.constant 1.000000e+00 : f32
    %374 = vector.broadcast %cst_86 : f32 to vector<8x32xf32>
    %375 = arith.addf %374, %373 : vector<8x32xf32>
    %376 = arith.divf %374, %375 : vector<8x32xf32>
    %377 = arith.mulf %368, %317 : vector<8x32xf32>
    %378 = arith.mulf %362, %370 : vector<8x32xf32>
    %379 = arith.addf %377, %378 : vector<8x32xf32>
    %380 = math.tanh %379 : vector<8x32xf32>
    %381 = arith.mulf %376, %380 : vector<8x32xf32>
    %c6 = arith.constant 6 : index
    %c0_87 = arith.constant 0 : index
    %c0_88 = arith.constant 0 : index
    %382 = vector.load %arg0[%c6, %c0_87, %c0_88] : memref<8x8x5xf32, #tpu.memory_space<vmem>>, vector<1x8x5xf32>
    %383 = vector.shape_cast %382 : vector<1x8x5xf32> to vector<8x5xf32>
    %cst_89 = arith.constant dense<0.000000e+00> : vector<8x128xf32>
    %384 = tpu.matmul %383, %0, %cst_89 {dimension_numbers = #tpu.dot_dimension_numbers<[1], [0], [0], [1], [0, 0, 1, 1], [], []>} : vector<8x5xf32>, vector<5x128xf32>, vector<8x128xf32> -> vector<8x128xf32>
    %cst_90 = arith.constant dense<0.000000e+00> : vector<8x128xf32>
    %385 = tpu.matmul %351, %2, %cst_90 {dimension_numbers = #tpu.dot_dimension_numbers<[1], [0], [0], [1], [0, 0, 1, 1], [], []>} : vector<8x32xf32>, vector<32x128xf32>, vector<8x128xf32> -> vector<8x128xf32>
    %386 = arith.addf %384, %385 : vector<8x128xf32>
    %387 = vector.broadcast %4 : vector<1x128xf32> to vector<8x128xf32>
    %388 = arith.addf %386, %387 : vector<8x128xf32>
    %389 = vector.extract_strided_slice %388 {offsets = [0, 0], sizes = [8, 32], strides = [1, 1]} : vector<8x128xf32> to vector<8x32xf32>
    %390 = arith.negf %389 : vector<8x32xf32>
    %391 = math.exp %390 : vector<8x32xf32>
    %cst_91 = arith.constant 1.000000e+00 : f32
    %392 = vector.broadcast %cst_91 : f32 to vector<8x32xf32>
    %393 = arith.addf %392, %391 : vector<8x32xf32>
    %394 = arith.divf %392, %393 : vector<8x32xf32>
    %395 = vector.extract_strided_slice %388 {offsets = [0, 32], sizes = [8, 32], strides = [1, 1]} : vector<8x128xf32> to vector<8x32xf32>
    %396 = arith.negf %395 : vector<8x32xf32>
    %397 = math.exp %396 : vector<8x32xf32>
    %cst_92 = arith.constant 1.000000e+00 : f32
    %398 = vector.broadcast %cst_92 : f32 to vector<8x32xf32>
    %399 = arith.addf %398, %397 : vector<8x32xf32>
    %400 = arith.divf %398, %399 : vector<8x32xf32>
    %401 = vector.extract_strided_slice %388 {offsets = [0, 64], sizes = [8, 32], strides = [1, 1]} : vector<8x128xf32> to vector<8x32xf32>
    %402 = math.tanh %401 : vector<8x32xf32>
    %403 = vector.extract_strided_slice %388 {offsets = [0, 96], sizes = [8, 32], strides = [1, 1]} : vector<8x128xf32> to vector<8x32xf32>
    %404 = arith.negf %403 : vector<8x32xf32>
    %405 = math.exp %404 : vector<8x32xf32>
    %cst_93 = arith.constant 1.000000e+00 : f32
    %406 = vector.broadcast %cst_93 : f32 to vector<8x32xf32>
    %407 = arith.addf %406, %405 : vector<8x32xf32>
    %408 = arith.divf %406, %407 : vector<8x32xf32>
    %409 = arith.mulf %400, %349 : vector<8x32xf32>
    %410 = arith.mulf %394, %402 : vector<8x32xf32>
    %411 = arith.addf %409, %410 : vector<8x32xf32>
    %412 = math.tanh %411 : vector<8x32xf32>
    %413 = arith.mulf %408, %412 : vector<8x32xf32>
    %cst_94 = arith.constant dense<0.000000e+00> : vector<8x128xf32>
    %414 = tpu.matmul %413, %1, %cst_94 {dimension_numbers = #tpu.dot_dimension_numbers<[1], [0], [0], [1], [0, 0, 1, 1], [], []>} : vector<8x32xf32>, vector<32x128xf32>, vector<8x128xf32> -> vector<8x128xf32>
    %cst_95 = arith.constant dense<0.000000e+00> : vector<8x128xf32>
    %415 = tpu.matmul %381, %3, %cst_95 {dimension_numbers = #tpu.dot_dimension_numbers<[1], [0], [0], [1], [0, 0, 1, 1], [], []>} : vector<8x32xf32>, vector<32x128xf32>, vector<8x128xf32> -> vector<8x128xf32>
    %416 = arith.addf %414, %415 : vector<8x128xf32>
    %417 = vector.broadcast %5 : vector<1x128xf32> to vector<8x128xf32>
    %418 = arith.addf %416, %417 : vector<8x128xf32>
    %419 = vector.extract_strided_slice %418 {offsets = [0, 0], sizes = [8, 32], strides = [1, 1]} : vector<8x128xf32> to vector<8x32xf32>
    %420 = arith.negf %419 : vector<8x32xf32>
    %421 = math.exp %420 : vector<8x32xf32>
    %cst_96 = arith.constant 1.000000e+00 : f32
    %422 = vector.broadcast %cst_96 : f32 to vector<8x32xf32>
    %423 = arith.addf %422, %421 : vector<8x32xf32>
    %424 = arith.divf %422, %423 : vector<8x32xf32>
    %425 = vector.extract_strided_slice %418 {offsets = [0, 32], sizes = [8, 32], strides = [1, 1]} : vector<8x128xf32> to vector<8x32xf32>
    %426 = arith.negf %425 : vector<8x32xf32>
    %427 = math.exp %426 : vector<8x32xf32>
    %cst_97 = arith.constant 1.000000e+00 : f32
    %428 = vector.broadcast %cst_97 : f32 to vector<8x32xf32>
    %429 = arith.addf %428, %427 : vector<8x32xf32>
    %430 = arith.divf %428, %429 : vector<8x32xf32>
    %431 = vector.extract_strided_slice %418 {offsets = [0, 64], sizes = [8, 32], strides = [1, 1]} : vector<8x128xf32> to vector<8x32xf32>
    %432 = math.tanh %431 : vector<8x32xf32>
    %433 = vector.extract_strided_slice %418 {offsets = [0, 96], sizes = [8, 32], strides = [1, 1]} : vector<8x128xf32> to vector<8x32xf32>
    %434 = arith.negf %433 : vector<8x32xf32>
    %435 = math.exp %434 : vector<8x32xf32>
    %cst_98 = arith.constant 1.000000e+00 : f32
    %436 = vector.broadcast %cst_98 : f32 to vector<8x32xf32>
    %437 = arith.addf %436, %435 : vector<8x32xf32>
    %438 = arith.divf %436, %437 : vector<8x32xf32>
    %439 = arith.mulf %430, %379 : vector<8x32xf32>
    %440 = arith.mulf %424, %432 : vector<8x32xf32>
    %441 = arith.addf %439, %440 : vector<8x32xf32>
    %442 = math.tanh %441 : vector<8x32xf32>
    %443 = arith.mulf %438, %442 : vector<8x32xf32>
    %c7 = arith.constant 7 : index
    %c0_99 = arith.constant 0 : index
    %c0_100 = arith.constant 0 : index
    %444 = vector.load %arg0[%c7, %c0_99, %c0_100] : memref<8x8x5xf32, #tpu.memory_space<vmem>>, vector<1x8x5xf32>
    %445 = vector.shape_cast %444 : vector<1x8x5xf32> to vector<8x5xf32>
    %cst_101 = arith.constant dense<0.000000e+00> : vector<8x128xf32>
    %446 = tpu.matmul %445, %0, %cst_101 {dimension_numbers = #tpu.dot_dimension_numbers<[1], [0], [0], [1], [0, 0, 1, 1], [], []>} : vector<8x5xf32>, vector<5x128xf32>, vector<8x128xf32> -> vector<8x128xf32>
    %cst_102 = arith.constant dense<0.000000e+00> : vector<8x128xf32>
    %447 = tpu.matmul %413, %2, %cst_102 {dimension_numbers = #tpu.dot_dimension_numbers<[1], [0], [0], [1], [0, 0, 1, 1], [], []>} : vector<8x32xf32>, vector<32x128xf32>, vector<8x128xf32> -> vector<8x128xf32>
    %448 = arith.addf %446, %447 : vector<8x128xf32>
    %449 = vector.broadcast %4 : vector<1x128xf32> to vector<8x128xf32>
    %450 = arith.addf %448, %449 : vector<8x128xf32>
    %451 = vector.extract_strided_slice %450 {offsets = [0, 0], sizes = [8, 32], strides = [1, 1]} : vector<8x128xf32> to vector<8x32xf32>
    %452 = arith.negf %451 : vector<8x32xf32>
    %453 = math.exp %452 : vector<8x32xf32>
    %cst_103 = arith.constant 1.000000e+00 : f32
    %454 = vector.broadcast %cst_103 : f32 to vector<8x32xf32>
    %455 = arith.addf %454, %453 : vector<8x32xf32>
    %456 = arith.divf %454, %455 : vector<8x32xf32>
    %457 = vector.extract_strided_slice %450 {offsets = [0, 32], sizes = [8, 32], strides = [1, 1]} : vector<8x128xf32> to vector<8x32xf32>
    %458 = arith.negf %457 : vector<8x32xf32>
    %459 = math.exp %458 : vector<8x32xf32>
    %cst_104 = arith.constant 1.000000e+00 : f32
    %460 = vector.broadcast %cst_104 : f32 to vector<8x32xf32>
    %461 = arith.addf %460, %459 : vector<8x32xf32>
    %462 = arith.divf %460, %461 : vector<8x32xf32>
    %463 = vector.extract_strided_slice %450 {offsets = [0, 64], sizes = [8, 32], strides = [1, 1]} : vector<8x128xf32> to vector<8x32xf32>
    %464 = math.tanh %463 : vector<8x32xf32>
    %465 = vector.extract_strided_slice %450 {offsets = [0, 96], sizes = [8, 32], strides = [1, 1]} : vector<8x128xf32> to vector<8x32xf32>
    %466 = arith.negf %465 : vector<8x32xf32>
    %467 = math.exp %466 : vector<8x32xf32>
    %cst_105 = arith.constant 1.000000e+00 : f32
    %468 = vector.broadcast %cst_105 : f32 to vector<8x32xf32>
    %469 = arith.addf %468, %467 : vector<8x32xf32>
    %470 = arith.divf %468, %469 : vector<8x32xf32>
    %471 = arith.mulf %462, %411 : vector<8x32xf32>
    %472 = arith.mulf %456, %464 : vector<8x32xf32>
    %473 = arith.addf %471, %472 : vector<8x32xf32>
    %474 = math.tanh %473 : vector<8x32xf32>
    %475 = arith.mulf %470, %474 : vector<8x32xf32>
    %cst_106 = arith.constant dense<0.000000e+00> : vector<8x128xf32>
    %476 = tpu.matmul %475, %1, %cst_106 {dimension_numbers = #tpu.dot_dimension_numbers<[1], [0], [0], [1], [0, 0, 1, 1], [], []>} : vector<8x32xf32>, vector<32x128xf32>, vector<8x128xf32> -> vector<8x128xf32>
    %cst_107 = arith.constant dense<0.000000e+00> : vector<8x128xf32>
    %477 = tpu.matmul %443, %3, %cst_107 {dimension_numbers = #tpu.dot_dimension_numbers<[1], [0], [0], [1], [0, 0, 1, 1], [], []>} : vector<8x32xf32>, vector<32x128xf32>, vector<8x128xf32> -> vector<8x128xf32>
    %478 = arith.addf %476, %477 : vector<8x128xf32>
    %479 = vector.broadcast %5 : vector<1x128xf32> to vector<8x128xf32>
    %480 = arith.addf %478, %479 : vector<8x128xf32>
    %481 = vector.extract_strided_slice %480 {offsets = [0, 0], sizes = [8, 32], strides = [1, 1]} : vector<8x128xf32> to vector<8x32xf32>
    %482 = arith.negf %481 : vector<8x32xf32>
    %483 = math.exp %482 : vector<8x32xf32>
    %cst_108 = arith.constant 1.000000e+00 : f32
    %484 = vector.broadcast %cst_108 : f32 to vector<8x32xf32>
    %485 = arith.addf %484, %483 : vector<8x32xf32>
    %486 = arith.divf %484, %485 : vector<8x32xf32>
    %487 = vector.extract_strided_slice %480 {offsets = [0, 32], sizes = [8, 32], strides = [1, 1]} : vector<8x128xf32> to vector<8x32xf32>
    %488 = arith.negf %487 : vector<8x32xf32>
    %489 = math.exp %488 : vector<8x32xf32>
    %cst_109 = arith.constant 1.000000e+00 : f32
    %490 = vector.broadcast %cst_109 : f32 to vector<8x32xf32>
    %491 = arith.addf %490, %489 : vector<8x32xf32>
    %492 = arith.divf %490, %491 : vector<8x32xf32>
    %493 = vector.extract_strided_slice %480 {offsets = [0, 64], sizes = [8, 32], strides = [1, 1]} : vector<8x128xf32> to vector<8x32xf32>
    %494 = math.tanh %493 : vector<8x32xf32>
    %495 = vector.extract_strided_slice %480 {offsets = [0, 96], sizes = [8, 32], strides = [1, 1]} : vector<8x128xf32> to vector<8x32xf32>
    %496 = arith.negf %495 : vector<8x32xf32>
    %497 = math.exp %496 : vector<8x32xf32>
    %cst_110 = arith.constant 1.000000e+00 : f32
    %498 = vector.broadcast %cst_110 : f32 to vector<8x32xf32>
    %499 = arith.addf %498, %497 : vector<8x32xf32>
    %500 = arith.divf %498, %499 : vector<8x32xf32>
    %501 = arith.mulf %492, %441 : vector<8x32xf32>
    %502 = arith.mulf %486, %494 : vector<8x32xf32>
    %503 = arith.addf %501, %502 : vector<8x32xf32>
    %504 = math.tanh %503 : vector<8x32xf32>
    %505 = arith.mulf %500, %504 : vector<8x32xf32>
    %c0_111 = arith.constant 0 : index
    %c0_112 = arith.constant 0 : index
    %c0_113 = arith.constant 0 : index
    %506 = vector.load %arg7[%c0_111, %c0_112, %c0_113] : memref<8x8x32xf32, #tpu.memory_space<vmem>>, vector<8x8x32xf32>
    %507 = vector.shape_cast %505 : vector<8x32xf32> to vector<1x8x32xf32>
    %508 = vector.broadcast %507 : vector<1x8x32xf32> to vector<8x8x32xf32>
    %509 = arith.mulf %506, %508 : vector<8x8x32xf32>
    %cst_114 = arith.constant dense<0.000000e+00> : vector<8x8xf32>
    %510 = vector.multi_reduction <add>, %509, %cst_114 [2] : vector<8x8x32xf32> to vector<8x8xf32>
    %cst_115 = arith.constant dense<0.000000e+00> : vector<8xf32>
    %511 = vector.multi_reduction <add>, %510, %cst_115 [1] : vector<8x8xf32> to vector<8xf32>
    %512 = vector.shape_cast %511 : vector<8xf32> to vector<8x1xf32>
    %c0_116 = arith.constant 0 : index
    %c0_117 = arith.constant 0 : index
    %513 = vector.load %arg8[%c0_116, %c0_117] : memref<8x1xf32, #tpu.memory_space<vmem>>, vector<8x1xf32>
    %514 = arith.addf %512, %513 : vector<8x1xf32>
    %c0_118 = arith.constant 0 : index
    %c0_119 = arith.constant 0 : index
    %515 = vector.load %arg9[%c0_118, %c0_119] : memref<8x1xf32, #tpu.memory_space<vmem>>, vector<8x1xf32>
    tpu.vector_store %arg9[%c0_118, %c0_119], %514 {strides = array<i32>} : memref<8x1xf32, #tpu.memory_space<vmem>>, vector<8x1xf32>,
    return
  }
}

</mosaic_0001>

<llo_original>
// kernel: tpu_custom_call.1
$region0: #{tpu_custom_call.1}
  #allocation0 [shape = 'u32[]', space=smem, size = 0x4, offset = 0x4, fixed_abs, tag = 'smem constant byte address 0x4 - core index']
  #allocation1 [shape = 'u32[72,128]{1,0:T(1,128)}', space=vmem, size = 0x9000, scoped, tag = 'internal scratch']
  %s0 = inlined_call_operand.vmem [shape: f32[8,8,5], index: 0, kind: input, shape index: {}]
  %s1 = inlined_call_operand.vmem [shape: f32[5,128], index: 1, kind: input, shape index: {}]
  %s2 = inlined_call_operand.vmem [shape: f32[32,128], index: 2, kind: input, shape index: {}]
  %s3 = inlined_call_operand.vmem [shape: f32[1,128], index: 3, kind: input, shape index: {}]
  %s4 = inlined_call_operand.hbm [shape: f32[32,128], index: 4, kind: input, shape index: {}]
  %s5 = inlined_call_operand.hbm [shape: f32[32,128], index: 5, kind: input, shape index: {}]
  %s6 = inlined_call_operand.vmem [shape: f32[1,128], index: 6, kind: input, shape index: {}]
  %s7 = inlined_call_operand.vmem [shape: f32[8,8,32], index: 7, kind: input, shape index: {}]
  %s8 = inlined_call_operand.vmem [shape: f32[8,1], index: 8, kind: input, shape index: {}]
  %s9 = inlined_call_operand.vmem [shape: f32[8,1], index: 9, kind: output, shape index: {}]
  %s10 = sld [smem:[#allocation0]]
  $region54: #{tpu_custom_call.1} parent=0
    _
  %s12 = ssub.s32 1, %s10
  %s13 = scalar_select 0, %s12, %s10
  $region1: #{tpu_custom_call.1} parent=0
    #allocation2 [shape = 'u8[16384]{0}', space=vmem, size = 0x4000, scoped, tag = 'input window, operand 4, single buffered']
    #allocation3 [shape = 's32[1]{0}', space=sflag, size = 0x4, scoped, tag = 'scoped memory for tpu_custom_call.1']
    #allocation4 [shape = 'u8[16384]{0}', space=vmem, size = 0x4000, scoped, tag = 'input window, operand 5, single buffered']
    #allocation5 [shape = 's32[1]{0}', space=sflag, size = 0x4, scoped, tag = 'scoped memory for tpu_custom_call.1']
    %14 = vsyncpa [#allocation3], 0
    %15 = vsyncpa [#allocation5], 0
    // Predicated region
    $region2: #{tpu_custom_call.1} parent=1 // pred_check
      _
    $region3: #{tpu_custom_call.1} parent=1 // pred_check_branch
      %17 = sbr.rel (0) target = $region5
    $region4: #{tpu_custom_call.1} parent=1 // pred_region
      _
    $region5: #{tpu_custom_call.1} parent=1 // pred_fallthru
      _
    // Predicated region
    $region6: #{tpu_custom_call.1} parent=1 // pred_check
      _
    $region7: #{tpu_custom_call.1} parent=1 // pred_check_branch
      %19 = sbr.rel (0) target = $region9
    $region8: #{tpu_custom_call.1} parent=1 // pred_region
      _
    $region9: #{tpu_custom_call.1} parent=1 // pred_fallthru
      _
    // Predicated region
    $region10: #{tpu_custom_call.1} parent=1 // pred_check
      _
    $region11: #{tpu_custom_call.1} parent=1 // pred_check_branch
      %21 = sbr.rel (0) target = $region13
    $region12: #{tpu_custom_call.1} parent=1 // pred_region
      _
    $region13: #{tpu_custom_call.1} parent=1 // pred_fallthru
      _
    // Predicated region
    $region14: #{tpu_custom_call.1} parent=1 // pred_check
      _
    $region15: #{tpu_custom_call.1} parent=1 // pred_check_branch
      %23 = sbr.rel (0) target = $region17
    $region16: #{tpu_custom_call.1} parent=1 // pred_region
      _
    $region17: #{tpu_custom_call.1} parent=1 // pred_fallthru
      _
    // Predicated region
    $region18: #{tpu_custom_call.1} parent=1 // pred_check
      _
    $region19: #{tpu_custom_call.1} parent=1 // pred_check_branch
      %25 = sbr.rel (0) target = $region21
    $region20: #{tpu_custom_call.1} parent=1 // pred_region
      %27 = vsyncadd [#allocation3], 0
      %s28 = sshll.u32 %s4, 4
      %s29 = int_to_ptr.hbm [resolvable:$true] %s28
      %s30 = sshll.u32 [#allocation2], 4
      %s31 = int_to_ptr.vmem [resolvable:$true] %s30
      %36 = dma.hbm_to_vmem [thread:$0]  %s29, 512, %s31, [#allocation3], 128, 128, 8
    $region21: #{tpu_custom_call.1} parent=1 // pred_fallthru
      _
    // Predicated region
    $region22: #{tpu_custom_call.1} parent=1 // pred_check
      _
    $region23: #{tpu_custom_call.1} parent=1 // pred_check_branch
      %38 = sbr.rel (0) target = $region25
    $region24: #{tpu_custom_call.1} parent=1 // pred_region
      %40 = vsyncadd [#allocation5], 0
      %s41 = sshll.u32 %s5, 4
      %s42 = int_to_ptr.hbm [resolvable:$true] %s41
      %s43 = sshll.u32 [#allocation4], 4
      %s44 = int_to_ptr.vmem [resolvable:$true] %s43
      %49 = dma.hbm_to_vmem [thread:$0]  %s42, 512, %s44, [#allocation5], 128, 128, 8
    $region25: #{tpu_custom_call.1} parent=1 // pred_fallthru
      _
    // Predicated region
    $region26: #{tpu_custom_call.1} parent=1 // pred_check
      _
    $region27: #{tpu_custom_call.1} parent=1 // pred_check_branch
      %51 = sbr.rel (0) target = $region29
    $region28: #{tpu_custom_call.1} parent=1 // pred_region
      _
    $region29: #{tpu_custom_call.1} parent=1 // pred_fallthru
      _
    // Predicated region
    $region30: #{tpu_custom_call.1} parent=1 // pred_check
      _
    $region31: #{tpu_custom_call.1} parent=1 // pred_check_branch
      %53 = sbr.rel (0) target = $region33
    $region32: #{tpu_custom_call.1} parent=1 // pred_region
      _
    $region33: #{tpu_custom_call.1} parent=1 // pred_fallthru
      _
    // Predicated region
    $region34: #{tpu_custom_call.1} parent=1 // pred_check
      _
    $region35: #{tpu_custom_call.1} parent=1 // pred_check_branch
      %55 = sbr.rel (0) target = $region37
    $region36: #{tpu_custom_call.1} parent=1 // pred_region
      _
    $region37: #{tpu_custom_call.1} parent=1 // pred_fallthru
      _
    // Predicated region
    $region38: #{tpu_custom_call.1} parent=1 // pred_check
      _
    $region39: #{tpu_custom_call.1} parent=1 // pred_check_branch
      %57 = sbr.rel (0) target = $region41
    $region40: #{tpu_custom_call.1} parent=1 // pred_region
      %59 = dma.done [#allocation3], 512
    $region41: #{tpu_custom_call.1} parent=1 // pred_fallthru
      _
    // Predicated region
    $region42: #{tpu_custom_call.1} parent=1 // pred_check
      _
    $region43: #{tpu_custom_call.1} parent=1 // pred_check_branch
      %61 = sbr.rel (0) target = $region45
    $region44: #{tpu_custom_call.1} parent=1 // pred_region
      %63 = dma.done [#allocation5], 512
    $region45: #{tpu_custom_call.1} parent=1 // pred_fallthru
      _
    %v64 = vld [vmem:[%s1] sm:$0x1f]
    %v65 = vld [vmem:[#allocation2] sm:$0xff]
    %v66 = vld [vmem:[#allocation2 + $0x8] sm:$0xff]
    %v67 = vld [vmem:[#allocation2 + $0x10] sm:$0xff]
    %v68 = vld [vmem:[#allocation2 + $0x18] sm:$0xff]
    %v69 = vld [vmem:[%s2] sm:$0xff]
    %v70 = vld [vmem:[%s2 + $0x8] sm:$0xff]
    %v71 = vld [vmem:[%s2 + $0x10] sm:$0xff]
    %v72 = vld [vmem:[%s2 + $0x18] sm:$0xff]
    %v73 = vld [vmem:[#allocation4] sm:$0xff]
    %v74 = vld [vmem:[#allocation4 + $0x8] sm:$0xff]
    %v75 = vld [vmem:[#allocation4 + $0x10] sm:$0xff]
    %v76 = vld [vmem:[#allocation4 + $0x18] sm:$0xff]
    %v77 = vld [vmem:[%s3] sm:$0x1]
    %v78 = vld [vmem:[%s6] sm:$0x1]
    %v79 = vld [vmem:[%s0] sm:$0xff]
    %vm80 = vcmask 261120
    %v82 = vsel %vm80, 0.0, 0
    %84 = vmatpush.msra.mxu0 0.0
    %85 = vmatpush.msra.mxu0 0.0
    %86 = vmatpush.msra.mxu0 0.0
    %87 = vmatpush.msra.mxu0 0.0
    %88 = vmatpush.msra.mxu0 0.0
    %89 = vmatpush.msra.mxu0 0.0
    %90 = vmatpush.msra.mxu0 0.0
    %91 = vmatpush.msra.mxu0 0.0
    %92 = vmatpush.msra.mxu0 0.0
    %93 = vmatpush.msra.mxu0 0.0
    %94 = vmatpush.msra.mxu0 0.0
    %95 = vmatpush.msra.mxu0 0.0
    %96 = vmatpush.msra.mxu0 %v72
    %97 = vmatpush.msra.mxu0 %v71
    %98 = vmatpush.msra.mxu0 %v70
    %99 = vmatpush.msra.mxu0 %v69
    %100 = vmatmul.f32.gmra.mxu0 %v82
    %v101 = vpop.f32.mrf.mxu0
    %v102 = vadd.f32 0.0, %v101
    %103 = vdwg.mxu0
    %vm104 = vcmask 39936
    %v106 = vsel %vm104, %v79, 0
    %vm108 = vcmask 1044480
    %v110 = vsel %vm108, %v64, 0
    %112 = vmatpush.msra.mxu0 0.0
    %113 = vmatpush.msra.mxu0 0.0
    %114 = vmatpush.msra.mxu0 0.0
    %115 = vmatpush.msra.mxu0 0.0
    %116 = vmatpush.msra.mxu0 0.0
    %117 = vmatpush.msra.mxu0 0.0
    %118 = vmatpush.msra.mxu0 0.0
    %119 = vmatpush.msra.mxu0 0.0
    %120 = vmatpush.msra.mxu0 0.0
    %121 = vmatpush.msra.mxu0 0.0
    %122 = vmatpush.msra.mxu0 0.0
    %123 = vmatpush.msra.mxu0 0.0
    %124 = vmatpush.msra.mxu0 0.0
    %125 = vmatpush.msra.mxu0 0.0
    %126 = vmatpush.msra.mxu0 0.0
    %127 = vmatpush.msra.mxu0 %v110
    %128 = vmatmul.f32.gmra.mxu0 %v106
    %v129 = vpop.f32.mrf.mxu0
    %v130 = vadd.f32 %v102, %v129
    %131 = vdwg.mxu0
    %v133 = vperm.slane %v77, 0
    %v135 = vadd.f32 %v130, %v133
    %v136 = vxor.u32 %v135, 2147483648
    %v137 = vmul.f32 %v136, 1.442695
    %v138 = vpow.pop %v137
    %v139 = vadd.f32 %v138, 1.0
    %v140 = vrcp.pop %v139
    %v141 = vmul.f32 %v139, %v140
    %v142 = vsub.f32 1.0, %v141
    %v143 = vmul.f32 %v140, %v142
    %v144 = vadd.f32 %v140, %v143
    %vm145 = vweird.f32 %v139
    %vm146 = vweird.f32 %v140
    %vm147 = vmor %vm145, %vm146
    %v148 = vsel %vm147, %v140, %v144
    %v149 = vand.u32 2147483647, %v139
    %vm150 = vcmp.eq.f32.partialorder %v149, 8.507059e+37
    %v151 = vand.u32 %v139, 2147483648
    %v152 = vor.u32 1.1754944e-38, %v151
    %v153 = vsel %vm150, %v152, %v148
    %v154 = vmul.f32 1.0, %v153
    %v155 = vtanh.pop %v135
    %v156 = vmul.f32 %v154, 0.0
    %158 = vrot.lane.b32.xlu0 %v155, 64
    %v159 = vpop.permute.xlu0 %158
    %v161 = vmul.f32 %v154, %v159
    %163 = vrot.lane.b32.xlu0 %v161, 32
    %v164 = vpop.permute.xlu0 %163
    %v166 = vadd.f32 %v156, %v164
    %v167 = vtanh.pop %v166
    %169 = vrot.lane.b32.xlu0 %v167, 64
    %v170 = vpop.permute.xlu0 %169
    %v172 = vmul.f32 %v154, %v170
    %173 = vmatpush.msra.mxu0 0.0
    %174 = vmatpush.msra.mxu0 0.0
    %175 = vmatpush.msra.mxu0 0.0
    %176 = vmatpush.msra.mxu0 0.0
    %177 = vmatpush.msra.mxu0 0.0
    %178 = vmatpush.msra.mxu0 0.0
    %179 = vmatpush.msra.mxu0 0.0
    %180 = vmatpush.msra.mxu0 0.0
    %181 = vmatpush.msra.mxu0 0.0
    %182 = vmatpush.msra.mxu0 0.0
    %183 = vmatpush.msra.mxu0 0.0
    %184 = vmatpush.msra.mxu0 0.0
    %185 = vmatpush.msra.mxu0 %v76
    %186 = vmatpush.msra.mxu0 %v75
    %187 = vmatpush.msra.mxu0 %v74
    %188 = vmatpush.msra.mxu0 %v73
    %189 = vmatmul.f32.gmra.mxu0 %v82
    %v190 = vpop.f32.mrf.mxu0
    %v191 = vadd.f32 0.0, %v190
    %192 = vdwg.mxu0
    %194 = vrot.lane.b32.xlu0 %v172, 32
    %v195 = vpop.permute.xlu0 %194
    %v196 = vsel %vm80, %v195, 0
    %198 = vmatpush.msra.mxu0 0.0
    %199 = vmatpush.msra.mxu0 0.0
    %200 = vmatpush.msra.mxu0 0.0
    %201 = vmatpush.msra.mxu0 0.0
    %202 = vmatpush.msra.mxu0 0.0
    %203 = vmatpush.msra.mxu0 0.0
    %204 = vmatpush.msra.mxu0 0.0
    %205 = vmatpush.msra.mxu0 0.0
    %206 = vmatpush.msra.mxu0 0.0
    %207 = vmatpush.msra.mxu0 0.0
    %208 = vmatpush.msra.mxu0 0.0
    %209 = vmatpush.msra.mxu0 0.0
    %210 = vmatpush.msra.mxu0 %v68
    %211 = vmatpush.msra.mxu0 %v67
    %212 = vmatpush.msra.mxu0 %v66
    %213 = vmatpush.msra.mxu0 %v65
    %214 = vmatmul.f32.gmra.mxu0 %v196
    %v215 = vpop.f32.mrf.mxu0
    %v216 = vadd.f32 %v191, %v215
    %217 = vdwg.mxu0
    %v219 = vperm.slane %v78, 0
    %v221 = vadd.f32 %v216, %v219
    %v222 = vxor.u32 %v221, 2147483648
    %v223 = vmul.f32 %v222, 1.442695
    %v224 = vpow.pop %v223
    %v225 = vadd.f32 %v224, 1.0
    %v226 = vrcp.pop %v225
    %v227 = vmul.f32 %v225, %v226
    %v228 = vsub.f32 1.0, %v227
    %v229 = vmul.f32 %v226, %v228
    %v230 = vadd.f32 %v226, %v229
    %vm231 = vweird.f32 %v225
    %vm232 = vweird.f32 %v226
    %vm233 = vmor %vm231, %vm232
    %v234 = vsel %vm233, %v226, %v230
    %v235 = vand.u32 2147483647, %v225
    %vm236 = vcmp.eq.f32.partialorder %v235, 8.507059e+37
    %v237 = vand.u32 %v225, 2147483648
    %v238 = vor.u32 1.1754944e-38, %v237
    %v239 = vsel %vm236, %v238, %v234
    %v240 = vmul.f32 1.0, %v239
    %v241 = vtanh.pop %v221
    %v242 = vmul.f32 %v240, 0.0
    %244 = vrot.lane.b32.xlu0 %v241, 64
    %v245 = vpop.permute.xlu0 %244
    %v247 = vmul.f32 %v240, %v245
    %249 = vrot.lane.b32.xlu0 %v247, 32
    %v250 = vpop.permute.xlu0 %249
    %v252 = vadd.f32 %v242, %v250
    %v253 = vtanh.pop %v252
    %255 = vrot.lane.b32.xlu0 %v253, 64
    %v256 = vpop.permute.xlu0 %255
    %v258 = vmul.f32 %v240, %v256
    %s259 = scalar_lea.vmem %s0, 8
    %v260 = vld [vmem:[%s259] sm:$0xff]
    %261 = vmatpush.msra.mxu0 0.0
    %262 = vmatpush.msra.mxu0 0.0
    %263 = vmatpush.msra.mxu0 0.0
    %264 = vmatpush.msra.mxu0 0.0
    %265 = vmatpush.msra.mxu0 0.0
    %266 = vmatpush.msra.mxu0 0.0
    %267 = vmatpush.msra.mxu0 0.0
    %268 = vmatpush.msra.mxu0 0.0
    %269 = vmatpush.msra.mxu0 0.0
    %270 = vmatpush.msra.mxu0 0.0
    %271 = vmatpush.msra.mxu0 0.0
    %272 = vmatpush.msra.mxu0 0.0
    %273 = vmatpush.msra.mxu0 %v72
    %274 = vmatpush.msra.mxu0 %v71
    %275 = vmatpush.msra.mxu0 %v70
    %276 = vmatpush.msra.mxu0 %v69
    %277 = vmatmul.f32.gmra.mxu0 %v196
    %v278 = vpop.f32.mrf.mxu0
    %v279 = vadd.f32 0.0, %v278
    %280 = vdwg.mxu0
    %v282 = vsel %vm104, %v260, 0
    %284 = vmatpush.msra.mxu0 0.0
    %285 = vmatpush.msra.mxu0 0.0
    %286 = vmatpush.msra.mxu0 0.0
    %287 = vmatpush.msra.mxu0 0.0
    %288 = vmatpush.msra.mxu0 0.0
    %289 = vmatpush.msra.mxu0 0.0
    %290 = vmatpush.msra.mxu0 0.0
    %291 = vmatpush.msra.mxu0 0.0
    %292 = vmatpush.msra.mxu0 0.0
    %293 = vmatpush.msra.mxu0 0.0
    %294 = vmatpush.msra.mxu0 0.0
    %295 = vmatpush.msra.mxu0 0.0
    %296 = vmatpush.msra.mxu0 0.0
    %297 = vmatpush.msra.mxu0 0.0
    %298 = vmatpush.msra.mxu0 0.0
    %299 = vmatpush.msra.mxu0 %v110
    %300 = vmatmul.f32.gmra.mxu0 %v282
    %v301 = vpop.f32.mrf.mxu0
    %v302 = vadd.f32 %v279, %v301
    %303 = vdwg.mxu0
    %v304 = vadd.f32 %v302, %v133
    %v305 = vxor.u32 %v304, 2147483648
    %v306 = vmul.f32 %v305, 1.442695
    %v307 = vpow.pop %v306
    %v308 = vadd.f32 %v307, 1.0
    %v309 = vrcp.pop %v308
    %v310 = vmul.f32 %v308, %v309
    %v311 = vsub.f32 1.0, %v310
    %v312 = vmul.f32 %v309, %v311
    %v313 = vadd.f32 %v309, %v312
    %vm314 = vweird.f32 %v308
    %vm315 = vweird.f32 %v309
    %vm316 = vmor %vm314, %vm315
    %v317 = vsel %vm316, %v309, %v313
    %v318 = vand.u32 2147483647, %v308
    %vm319 = vcmp.eq.f32.partialorder %v318, 8.507059e+37
    %v320 = vand.u32 %v308, 2147483648
    %v321 = vor.u32 1.1754944e-38, %v320
    %v322 = vsel %vm319, %v321, %v317
    %v323 = vmul.f32 1.0, %v322
    %v324 = vtanh.pop %v304
    %v325 = vmul.f32 %v323, %v166
    %327 = vrot.lane.b32.xlu0 %v324, 64
    %v328 = vpop.permute.xlu0 %327
    %v330 = vmul.f32 %v323, %v328
    %332 = vrot.lane.b32.xlu0 %v330, 32
    %v333 = vpop.permute.xlu0 %332
    %v335 = vadd.f32 %v325, %v333
    %v336 = vtanh.pop %v335
    %338 = vrot.lane.b32.xlu0 %v336, 64
    %v339 = vpop.permute.xlu0 %338
    %v341 = vmul.f32 %v323, %v339
    %343 = vrot.lane.b32.xlu0 %v258, 32
    %v344 = vpop.permute.xlu0 %343
    %v345 = vsel %vm80, %v344, 0
    %347 = vmatpush.msra.mxu0 0.0
    %348 = vmatpush.msra.mxu0 0.0
    %349 = vmatpush.msra.mxu0 0.0
    %350 = vmatpush.msra.mxu0 0.0
    %351 = vmatpush.msra.mxu0 0.0
    %352 = vmatpush.msra.mxu0 0.0
    %353 = vmatpush.msra.mxu0 0.0
    %354 = vmatpush.msra.mxu0 0.0
    %355 = vmatpush.msra.mxu0 0.0
    %356 = vmatpush.msra.mxu0 0.0
    %357 = vmatpush.msra.mxu0 0.0
    %358 = vmatpush.msra.mxu0 0.0
    %359 = vmatpush.msra.mxu0 %v76
    %360 = vmatpush.msra.mxu0 %v75
    %361 = vmatpush.msra.mxu0 %v74
    %362 = vmatpush.msra.mxu0 %v73
    %363 = vmatmul.f32.gmra.mxu0 %v345
    %v364 = vpop.f32.mrf.mxu0
    %v365 = vadd.f32 0.0, %v364
    %366 = vdwg.mxu0
    %368 = vrot.lane.b32.xlu0 %v341, 32
    %v369 = vpop.permute.xlu0 %368
    %v370 = vsel %vm80, %v369, 0
    %372 = vmatpush.msra.mxu0 0.0
    %373 = vmatpush.msra.mxu0 0.0
    %374 = vmatpush.msra.mxu0 0.0
    %375 = vmatpush.msra.mxu0 0.0
    %376 = vmatpush.msra.mxu0 0.0
    %377 = vmatpush.msra.mxu0 0.0
    %378 = vmatpush.msra.mxu0 0.0
    %379 = vmatpush.msra.mxu0 0.0
    %380 = vmatpush.msra.mxu0 0.0
    %381 = vmatpush.msra.mxu0 0.0
    %382 = vmatpush.msra.mxu0 0.0
    %383 = vmatpush.msra.mxu0 0.0
    %384 = vmatpush.msra.mxu0 %v68
    %385 = vmatpush.msra.mxu0 %v67
    %386 = vmatpush.msra.mxu0 %v66
    %387 = vmatpush.msra.mxu0 %v65
    %388 = vmatmul.f32.gmra.mxu0 %v370
    %v389 = vpop.f32.mrf.mxu0
    %v390 = vadd.f32 %v365, %v389
    %391 = vdwg.mxu0
    %v392 = vadd.f32 %v390, %v219
    %v393 = vxor.u32 %v392, 2147483648
    %v394 = vmul.f32 %v393, 1.442695
    %v395 = vpow.pop %v394
    %v396 = vadd.f32 %v395, 1.0
    %v397 = vrcp.pop %v396
    %v398 = vmul.f32 %v396, %v397
    %v399 = vsub.f32 1.0, %v398
    %v400 = vmul.f32 %v397, %v399
    %v401 = vadd.f32 %v397, %v400
    %vm402 = vweird.f32 %v396
    %vm403 = vweird.f32 %v397
    %vm404 = vmor %vm402, %vm403
    %v405 = vsel %vm404, %v397, %v401
    %v406 = vand.u32 2147483647, %v396
    %vm407 = vcmp.eq.f32.partialorder %v406, 8.507059e+37
    %v408 = vand.u32 %v396, 2147483648
    %v409 = vor.u32 1.1754944e-38, %v408
    %v410 = vsel %vm407, %v409, %v405
    %v411 = vmul.f32 1.0, %v410
    %v412 = vtanh.pop %v392
    %v413 = vmul.f32 %v411, %v252
    %415 = vrot.lane.b32.xlu0 %v412, 64
    %v416 = vpop.permute.xlu0 %415
    %v418 = vmul.f32 %v411, %v416
    %420 = vrot.lane.b32.xlu0 %v418, 32
    %v421 = vpop.permute.xlu0 %420
    %v423 = vadd.f32 %v413, %v421
    %v424 = vtanh.pop %v423
    %426 = vrot.lane.b32.xlu0 %v424, 64
    %v427 = vpop.permute.xlu0 %426
    %v429 = vmul.f32 %v411, %v427
    %s430 = scalar_lea.vmem %s0, 16
    %v431 = vld [vmem:[%s430] sm:$0xff]
    %432 = vmatpush.msra.mxu0 0.0
    %433 = vmatpush.msra.mxu0 0.0
    %434 = vmatpush.msra.mxu0 0.0
    %435 = vmatpush.msra.mxu0 0.0
    %436 = vmatpush.msra.mxu0 0.0
    %437 = vmatpush.msra.mxu0 0.0
    %438 = vmatpush.msra.mxu0 0.0
    %439 = vmatpush.msra.mxu0 0.0
    %440 = vmatpush.msra.mxu0 0.0
    %441 = vmatpush.msra.mxu0 0.0
    %442 = vmatpush.msra.mxu0 0.0
    %443 = vmatpush.msra.mxu0 0.0
    %444 = vmatpush.msra.mxu0 %v72
    %445 = vmatpush.msra.mxu0 %v71
    %446 = vmatpush.msra.mxu0 %v70
    %447 = vmatpush.msra.mxu0 %v69
    %448 = vmatmul.f32.gmra.mxu0 %v370
    %v449 = vpop.f32.mrf.mxu0
    %v450 = vadd.f32 0.0, %v449
    %451 = vdwg.mxu0
    %v453 = vsel %vm104, %v431, 0
    %455 = vmatpush.msra.mxu0 0.0
    %456 = vmatpush.msra.mxu0 0.0
    %457 = vmatpush.msra.mxu0 0.0
    %458 = vmatpush.msra.mxu0 0.0
    %459 = vmatpush.msra.mxu0 0.0
    %460 = vmatpush.msra.mxu0 0.0
    %461 = vmatpush.msra.mxu0 0.0
    %462 = vmatpush.msra.mxu0 0.0
    %463 = vmatpush.msra.mxu0 0.0
    %464 = vmatpush.msra.mxu0 0.0
    %465 = vmatpush.msra.mxu0 0.0
    %466 = vmatpush.msra.mxu0 0.0
    %467 = vmatpush.msra.mxu0 0.0
    %468 = vmatpush.msra.mxu0 0.0
    %469 = vmatpush.msra.mxu0 0.0
    %470 = vmatpush.msra.mxu0 %v110
    %471 = vmatmul.f32.gmra.mxu0 %v453
    %v472 = vpop.f32.mrf.mxu0
    %v473 = vadd.f32 %v450, %v472
    %474 = vdwg.mxu0
    %v475 = vadd.f32 %v473, %v133
    %v476 = vxor.u32 %v475, 2147483648
    %v477 = vmul.f32 %v476, 1.442695
    %v478 = vpow.pop %v477
    %v479 = vadd.f32 %v478, 1.0
    %v480 = vrcp.pop %v479
    %v481 = vmul.f32 %v479, %v480
    %v482 = vsub.f32 1.0, %v481
    %v483 = vmul.f32 %v480, %v482
    %v484 = vadd.f32 %v480, %v483
    %vm485 = vweird.f32 %v479
    %vm486 = vweird.f32 %v480
    %vm487 = vmor %vm485, %vm486
    %v488 = vsel %vm487, %v480, %v484
    %v489 = vand.u32 2147483647, %v479
    %vm490 = vcmp.eq.f32.partialorder %v489, 8.507059e+37
    %v491 = vand.u32 %v479, 2147483648
    %v492 = vor.u32 1.1754944e-38, %v491
    %v493 = vsel %vm490, %v492, %v488
    %v494 = vmul.f32 1.0, %v493
    %v495 = vtanh.pop %v475
    %v496 = vmul.f32 %v494, %v335
    %498 = vrot.lane.b32.xlu0 %v495, 64
    %v499 = vpop.permute.xlu0 %498
    %v501 = vmul.f32 %v494, %v499
    %503 = vrot.lane.b32.xlu0 %v501, 32
    %v504 = vpop.permute.xlu0 %503
    %v506 = vadd.f32 %v496, %v504
    %v507 = vtanh.pop %v506
    %509 = vrot.lane.b32.xlu0 %v507, 64
    %v510 = vpop.permute.xlu0 %509
    %v512 = vmul.f32 %v494, %v510
    %514 = vrot.lane.b32.xlu0 %v429, 32
    %v515 = vpop.permute.xlu0 %514
    %v516 = vsel %vm80, %v515, 0
    %518 = vmatpush.msra.mxu0 0.0
    %519 = vmatpush.msra.mxu0 0.0
    %520 = vmatpush.msra.mxu0 0.0
    %521 = vmatpush.msra.mxu0 0.0
    %522 = vmatpush.msra.mxu0 0.0
    %523 = vmatpush.msra.mxu0 0.0
    %524 = vmatpush.msra.mxu0 0.0
    %525 = vmatpush.msra.mxu0 0.0
    %526 = vmatpush.msra.mxu0 0.0
    %527 = vmatpush.msra.mxu0 0.0
    %528 = vmatpush.msra.mxu0 0.0
    %529 = vmatpush.msra.mxu0 0.0
    %530 = vmatpush.msra.mxu0 %v76
    %531 = vmatpush.msra.mxu0 %v75
    %532 = vmatpush.msra.mxu0 %v74
    %533 = vmatpush.msra.mxu0 %v73
    %534 = vmatmul.f32.gmra.mxu0 %v516
    %v535 = vpop.f32.mrf.mxu0
    %v536 = vadd.f32 0.0, %v535
    %537 = vdwg.mxu0
    %539 = vrot.lane.b32.xlu0 %v512, 32
    %v540 = vpop.permute.xlu0 %539
    %v541 = vsel %vm80, %v540, 0
    %543 = vmatpush.msra.mxu0 0.0
    %544 = vmatpush.msra.mxu0 0.0
    %545 = vmatpush.msra.mxu0 0.0
    %546 = vmatpush.msra.mxu0 0.0
    %547 = vmatpush.msra.mxu0 0.0
    %548 = vmatpush.msra.mxu0 0.0
    %549 = vmatpush.msra.mxu0 0.0
    %550 = vmatpush.msra.mxu0 0.0
    %551 = vmatpush.msra.mxu0 0.0
    %552 = vmatpush.msra.mxu0 0.0
    %553 = vmatpush.msra.mxu0 0.0
    %554 = vmatpush.msra.mxu0 0.0
    %555 = vmatpush.msra.mxu0 %v68
    %556 = vmatpush.msra.mxu0 %v67
    %557 = vmatpush.msra.mxu0 %v66
    %558 = vmatpush.msra.mxu0 %v65
    %559 = vmatmul.f32.gmra.mxu0 %v541
    %v560 = vpop.f32.mrf.mxu0
    %v561 = vadd.f32 %v536, %v560
    %562 = vdwg.mxu0
    %v563 = vadd.f32 %v561, %v219
    %v564 = vxor.u32 %v563, 2147483648
    %v565 = vmul.f32 %v564, 1.442695
    %v566 = vpow.pop %v565
    %v567 = vadd.f32 %v566, 1.0
    %v568 = vrcp.pop %v567
    %v569 = vmul.f32 %v567, %v568
    %v570 = vsub.f32 1.0, %v569
    %v571 = vmul.f32 %v568, %v570
    %v572 = vadd.f32 %v568, %v571
    %vm573 = vweird.f32 %v567
    %vm574 = vweird.f32 %v568
    %vm575 = vmor %vm573, %vm574
    %v576 = vsel %vm575, %v568, %v572
    %v577 = vand.u32 2147483647, %v567
    %vm578 = vcmp.eq.f32.partialorder %v577, 8.507059e+37
    %v579 = vand.u32 %v567, 2147483648
    %v580 = vor.u32 1.1754944e-38, %v579
    %v581 = vsel %vm578, %v580, %v576
    %v582 = vmul.f32 1.0, %v581
    %v583 = vtanh.pop %v563
    %v584 = vmul.f32 %v582, %v423
    %586 = vrot.lane.b32.xlu0 %v583, 64
    %v587 = vpop.permute.xlu0 %586
    %v589 = vmul.f32 %v582, %v587
    %591 = vrot.lane.b32.xlu0 %v589, 32
    %v592 = vpop.permute.xlu0 %591
    %v594 = vadd.f32 %v584, %v592
    %v595 = vtanh.pop %v594
    %597 = vrot.lane.b32.xlu0 %v595, 64
    %v598 = vpop.permute.xlu0 %597
    %v600 = vmul.f32 %v582, %v598
    %s601 = scalar_lea.vmem %s0, 24
    %v602 = vld [vmem:[%s601] sm:$0xff]
    %603 = vmatpush.msra.mxu0 0.0
    %604 = vmatpush.msra.mxu0 0.0
    %605 = vmatpush.msra.mxu0 0.0
    %606 = vmatpush.msra.mxu0 0.0
    %607 = vmatpush.msra.mxu0 0.0
    %608 = vmatpush.msra.mxu0 0.0
    %609 = vmatpush.msra.mxu0 0.0
    %610 = vmatpush.msra.mxu0 0.0
    %611 = vmatpush.msra.mxu0 0.0
    %612 = vmatpush.msra.mxu0 0.0
    %613 = vmatpush.msra.mxu0 0.0
    %614 = vmatpush.msra.mxu0 0.0
    %615 = vmatpush.msra.mxu0 %v72
    %616 = vmatpush.msra.mxu0 %v71
    %617 = vmatpush.msra.mxu0 %v70
    %618 = vmatpush.msra.mxu0 %v69
    %619 = vmatmul.f32.gmra.mxu0 %v541
    %v620 = vpop.f32.mrf.mxu0
    %v621 = vadd.f32 0.0, %v620
    %622 = vdwg.mxu0
    %v624 = vsel %vm104, %v602, 0
    %626 = vmatpush.msra.mxu0 0.0
    %627 = vmatpush.msra.mxu0 0.0
    %628 = vmatpush.msra.mxu0 0.0
    %629 = vmatpush.msra.mxu0 0.0
    %630 = vmatpush.msra.mxu0 0.0
    %631 = vmatpush.msra.mxu0 0.0
    %632 = vmatpush.msra.mxu0 0.0
    %633 = vmatpush.msra.mxu0 0.0
    %634 = vmatpush.msra.mxu0 0.0
    %635 = vmatpush.msra.mxu0 0.0
    %636 = vmatpush.msra.mxu0 0.0
    %637 = vmatpush.msra.mxu0 0.0
    %638 = vmatpush.msra.mxu0 0.0
    %639 = vmatpush.msra.mxu0 0.0
    %640 = vmatpush.msra.mxu0 0.0
    %641 = vmatpush.msra.mxu0 %v110
    %642 = vmatmul.f32.gmra.mxu0 %v624
    %v643 = vpop.f32.mrf.mxu0
    %v644 = vadd.f32 %v621, %v643
    %645 = vdwg.mxu0
    %v646 = vadd.f32 %v644, %v133
    %v647 = vxor.u32 %v646, 2147483648
    %v648 = vmul.f32 %v647, 1.442695
    %v649 = vpow.pop %v648
    %v650 = vadd.f32 %v649, 1.0
    %v651 = vrcp.pop %v650
    %v652 = vmul.f32 %v650, %v651
    %v653 = vsub.f32 1.0, %v652
    %v654 = vmul.f32 %v651, %v653
    %v655 = vadd.f32 %v651, %v654
    %vm656 = vweird.f32 %v650
    %vm657 = vweird.f32 %v651
    %vm658 = vmor %vm656, %vm657
    %v659 = vsel %vm658, %v651, %v655
    %v660 = vand.u32 2147483647, %v650
    %vm661 = vcmp.eq.f32.partialorder %v660, 8.507059e+37
    %v662 = vand.u32 %v650, 2147483648
    %v663 = vor.u32 1.1754944e-38, %v662
    %v664 = vsel %vm661, %v663, %v659
    %v665 = vmul.f32 1.0, %v664
    %v666 = vtanh.pop %v646
    %v667 = vmul.f32 %v665, %v506
    %669 = vrot.lane.b32.xlu0 %v666, 64
    %v670 = vpop.permute.xlu0 %669
    %v672 = vmul.f32 %v665, %v670
    %674 = vrot.lane.b32.xlu0 %v672, 32
    %v675 = vpop.permute.xlu0 %674
    %v677 = vadd.f32 %v667, %v675
    %v678 = vtanh.pop %v677
    %680 = vrot.lane.b32.xlu0 %v678, 64
    %v681 = vpop.permute.xlu0 %680
    %v683 = vmul.f32 %v665, %v681
    %685 = vrot.lane.b32.xlu0 %v600, 32
    %v686 = vpop.permute.xlu0 %685
    %v687 = vsel %vm80, %v686, 0
    %689 = vmatpush.msra.mxu0 0.0
    %690 = vmatpush.msra.mxu0 0.0
    %691 = vmatpush.msra.mxu0 0.0
    %692 = vmatpush.msra.mxu0 0.0
    %693 = vmatpush.msra.mxu0 0.0
    %694 = vmatpush.msra.mxu0 0.0
    %695 = vmatpush.msra.mxu0 0.0
    %696 = vmatpush.msra.mxu0 0.0
    %697 = vmatpush.msra.mxu0 0.0
    %698 = vmatpush.msra.mxu0 0.0
    %699 = vmatpush.msra.mxu0 0.0
    %700 = vmatpush.msra.mxu0 0.0
    %701 = vmatpush.msra.mxu0 %v76
    %702 = vmatpush.msra.mxu0 %v75
    %703 = vmatpush.msra.mxu0 %v74
    %704 = vmatpush.msra.mxu0 %v73
    %705 = vmatmul.f32.gmra.mxu0 %v687
    %v706 = vpop.f32.mrf.mxu0
    %v707 = vadd.f32 0.0, %v706
    %708 = vdwg.mxu0
    %710 = vrot.lane.b32.xlu0 %v683, 32
    %v711 = vpop.permute.xlu0 %710
    %v712 = vsel %vm80, %v711, 0
    %714 = vmatpush.msra.mxu0 0.0
    %715 = vmatpush.msra.mxu0 0.0
    %716 = vmatpush.msra.mxu0 0.0
    %717 = vmatpush.msra.mxu0 0.0
    %718 = vmatpush.msra.mxu0 0.0
    %719 = vmatpush.msra.mxu0 0.0
    %720 = vmatpush.msra.mxu0 0.0
    %721 = vmatpush.msra.mxu0 0.0
    %722 = vmatpush.msra.mxu0 0.0
    %723 = vmatpush.msra.mxu0 0.0
    %724 = vmatpush.msra.mxu0 0.0
    %725 = vmatpush.msra.mxu0 0.0
    %726 = vmatpush.msra.mxu0 %v68
    %727 = vmatpush.msra.mxu0 %v67
    %728 = vmatpush.msra.mxu0 %v66
    %729 = vmatpush.msra.mxu0 %v65
    %730 = vmatmul.f32.gmra.mxu0 %v712
    %v731 = vpop.f32.mrf.mxu0
    %v732 = vadd.f32 %v707, %v731
    %733 = vdwg.mxu0
    %v734 = vadd.f32 %v732, %v219
    %v735 = vxor.u32 %v734, 2147483648
    %v736 = vmul.f32 %v735, 1.442695
    %v737 = vpow.pop %v736
    %v738 = vadd.f32 %v737, 1.0
    %v739 = vrcp.pop %v738
    %v740 = vmul.f32 %v738, %v739
    %v741 = vsub.f32 1.0, %v740
    %v742 = vmul.f32 %v739, %v741
    %v743 = vadd.f32 %v739, %v742
    %vm744 = vweird.f32 %v738
    %vm745 = vweird.f32 %v739
    %vm746 = vmor %vm744, %vm745
    %v747 = vsel %vm746, %v739, %v743
    %v748 = vand.u32 2147483647, %v738
    %vm749 = vcmp.eq.f32.partialorder %v748, 8.507059e+37
    %v750 = vand.u32 %v738, 2147483648
    %v751 = vor.u32 1.1754944e-38, %v750
    %v752 = vsel %vm749, %v751, %v747
    %v753 = vmul.f32 1.0, %v752
    %v754 = vtanh.pop %v734
    %v755 = vmul.f32 %v753, %v594
    %757 = vrot.lane.b32.xlu0 %v754, 64
    %v758 = vpop.permute.xlu0 %757
    %v760 = vmul.f32 %v753, %v758
    %762 = vrot.lane.b32.xlu0 %v760, 32
    %v763 = vpop.permute.xlu0 %762
    %v765 = vadd.f32 %v755, %v763
    %v766 = vtanh.pop %v765
    %768 = vrot.lane.b32.xlu0 %v766, 64
    %v769 = vpop.permute.xlu0 %768
    %v771 = vmul.f32 %v753, %v769
    %s772 = scalar_lea.vmem %s0, 32
    %v773 = vld [vmem:[%s772] sm:$0xff]
    %774 = vmatpush.msra.mxu0 0.0
    %775 = vmatpush.msra.mxu0 0.0
    %776 = vmatpush.msra.mxu0 0.0
    %777 = vmatpush.msra.mxu0 0.0
    %778 = vmatpush.msra.mxu0 0.0
    %779 = vmatpush.msra.mxu0 0.0
    %780 = vmatpush.msra.mxu0 0.0
    %781 = vmatpush.msra.mxu0 0.0
    %782 = vmatpush.msra.mxu0 0.0
    %783 = vmatpush.msra.mxu0 0.0
    %784 = vmatpush.msra.mxu0 0.0
    %785 = vmatpush.msra.mxu0 0.0
    %786 = vmatpush.msra.mxu0 %v72
    %787 = vmatpush.msra.mxu0 %v71
    %788 = vmatpush.msra.mxu0 %v70
    %789 = vmatpush.msra.mxu0 %v69
    %790 = vmatmul.f32.gmra.mxu0 %v712
    %v791 = vpop.f32.mrf.mxu0
    %v792 = vadd.f32 0.0, %v791
    %793 = vdwg.mxu0
    %v795 = vsel %vm104, %v773, 0
    %797 = vmatpush.msra.mxu0 0.0
    %798 = vmatpush.msra.mxu0 0.0
    %799 = vmatpush.msra.mxu0 0.0
    %800 = vmatpush.msra.mxu0 0.0
    %801 = vmatpush.msra.mxu0 0.0
    %802 = vmatpush.msra.mxu0 0.0
    %803 = vmatpush.msra.mxu0 0.0
    %804 = vmatpush.msra.mxu0 0.0
    %805 = vmatpush.msra.mxu0 0.0
    %806 = vmatpush.msra.mxu0 0.0
    %807 = vmatpush.msra.mxu0 0.0
    %808 = vmatpush.msra.mxu0 0.0
    %809 = vmatpush.msra.mxu0 0.0
    %810 = vmatpush.msra.mxu0 0.0
    %811 = vmatpush.msra.mxu0 0.0
    %812 = vmatpush.msra.mxu0 %v110
    %813 = vmatmul.f32.gmra.mxu0 %v795
    %v814 = vpop.f32.mrf.mxu0
    %v815 = vadd.f32 %v792, %v814
    %816 = vdwg.mxu0
    %v817 = vadd.f32 %v815, %v133
    %v818 = vxor.u32 %v817, 2147483648
    %v819 = vmul.f32 %v818, 1.442695
    %v820 = vpow.pop %v819
    %v821 = vadd.f32 %v820, 1.0
    %v822 = vrcp.pop %v821
    %v823 = vmul.f32 %v821, %v822
    %v824 = vsub.f32 1.0, %v823
    %v825 = vmul.f32 %v822, %v824
    %v826 = vadd.f32 %v822, %v825
    %vm827 = vweird.f32 %v821
    %vm828 = vweird.f32 %v822
    %vm829 = vmor %vm827, %vm828
    %v830 = vsel %vm829, %v822, %v826
    %v831 = vand.u32 2147483647, %v821
    %vm832 = vcmp.eq.f32.partialorder %v831, 8.507059e+37
    %v833 = vand.u32 %v821, 2147483648
    %v834 = vor.u32 1.1754944e-38, %v833
    %v835 = vsel %vm832, %v834, %v830
    %v836 = vmul.f32 1.0, %v835
    %v837 = vtanh.pop %v817
    %v838 = vmul.f32 %v836, %v677
    %840 = vrot.lane.b32.xlu0 %v837, 64
    %v841 = vpop.permute.xlu0 %840
    %v843 = vmul.f32 %v836, %v841
    %845 = vrot.lane.b32.xlu0 %v843, 32
    %v846 = vpop.permute.xlu0 %845
    %v848 = vadd.f32 %v838, %v846
    %v849 = vtanh.pop %v848
    %851 = vrot.lane.b32.xlu0 %v849, 64
    %v852 = vpop.permute.xlu0 %851
    %v854 = vmul.f32 %v836, %v852
    %856 = vrot.lane.b32.xlu0 %v771, 32
    %v857 = vpop.permute.xlu0 %856
    %v858 = vsel %vm80, %v857, 0
    %860 = vmatpush.msra.mxu0 0.0
    %861 = vmatpush.msra.mxu0 0.0
    %862 = vmatpush.msra.mxu0 0.0
    %863 = vmatpush.msra.mxu0 0.0
    %864 = vmatpush.msra.mxu0 0.0
    %865 = vmatpush.msra.mxu0 0.0
    %866 = vmatpush.msra.mxu0 0.0
    %867 = vmatpush.msra.mxu0 0.0
    %868 = vmatpush.msra.mxu0 0.0
    %869 = vmatpush.msra.mxu0 0.0
    %870 = vmatpush.msra.mxu0 0.0
    %871 = vmatpush.msra.mxu0 0.0
    %872 = vmatpush.msra.mxu0 %v76
    %873 = vmatpush.msra.mxu0 %v75
    %874 = vmatpush.msra.mxu0 %v74
    %875 = vmatpush.msra.mxu0 %v73
    %876 = vmatmul.f32.gmra.mxu0 %v858
    %v877 = vpop.f32.mrf.mxu0
    %v878 = vadd.f32 0.0, %v877
    %879 = vdwg.mxu0
    %881 = vrot.lane.b32.xlu0 %v854, 32
    %v882 = vpop.permute.xlu0 %881
    %v883 = vsel %vm80, %v882, 0
    %885 = vmatpush.msra.mxu0 0.0
    %886 = vmatpush.msra.mxu0 0.0
    %887 = vmatpush.msra.mxu0 0.0
    %888 = vmatpush.msra.mxu0 0.0
    %889 = vmatpush.msra.mxu0 0.0
    %890 = vmatpush.msra.mxu0 0.0
    %891 = vmatpush.msra.mxu0 0.0
    %892 = vmatpush.msra.mxu0 0.0
    %893 = vmatpush.msra.mxu0 0.0
    %894 = vmatpush.msra.mxu0 0.0
    %895 = vmatpush.msra.mxu0 0.0
    %896 = vmatpush.msra.mxu0 0.0
    %897 = vmatpush.msra.mxu0 %v68
    %898 = vmatpush.msra.mxu0 %v67
    %899 = vmatpush.msra.mxu0 %v66
    %900 = vmatpush.msra.mxu0 %v65
    %901 = vmatmul.f32.gmra.mxu0 %v883
    %v902 = vpop.f32.mrf.mxu0
    %v903 = vadd.f32 %v878, %v902
    %904 = vdwg.mxu0
    %v905 = vadd.f32 %v903, %v219
    %v906 = vxor.u32 %v905, 2147483648
    %v907 = vmul.f32 %v906, 1.442695
    %v908 = vpow.pop %v907
    %v909 = vadd.f32 %v908, 1.0
    %v910 = vrcp.pop %v909
    %v911 = vmul.f32 %v909, %v910
    %v912 = vsub.f32 1.0, %v911
    %v913 = vmul.f32 %v910, %v912
    %v914 = vadd.f32 %v910, %v913
    %vm915 = vweird.f32 %v909
    %vm916 = vweird.f32 %v910
    %vm917 = vmor %vm915, %vm916
    %v918 = vsel %vm917, %v910, %v914
    %v919 = vand.u32 2147483647, %v909
    %vm920 = vcmp.eq.f32.partialorder %v919, 8.507059e+37
    %v921 = vand.u32 %v909, 2147483648
    %v922 = vor.u32 1.1754944e-38, %v921
    %v923 = vsel %vm920, %v922, %v918
    %v924 = vmul.f32 1.0, %v923
    %v925 = vtanh.pop %v905
    %v926 = vmul.f32 %v924, %v765
    %928 = vrot.lane.b32.xlu0 %v925, 64
    %v929 = vpop.permute.xlu0 %928
    %v931 = vmul.f32 %v924, %v929
    %933 = vrot.lane.b32.xlu0 %v931, 32
    %v934 = vpop.permute.xlu0 %933
    %v936 = vadd.f32 %v926, %v934
    %v937 = vtanh.pop %v936
    %939 = vrot.lane.b32.xlu0 %v937, 64
    %v940 = vpop.permute.xlu0 %939
    %v942 = vmul.f32 %v924, %v940
    %s943 = scalar_lea.vmem %s0, 40
    %v944 = vld [vmem:[%s943] sm:$0xff]
    %945 = vmatpush.msra.mxu0 0.0
    %946 = vmatpush.msra.mxu0 0.0
    %947 = vmatpush.msra.mxu0 0.0
    %948 = vmatpush.msra.mxu0 0.0
    %949 = vmatpush.msra.mxu0 0.0
    %950 = vmatpush.msra.mxu0 0.0
    %951 = vmatpush.msra.mxu0 0.0
    %952 = vmatpush.msra.mxu0 0.0
    %953 = vmatpush.msra.mxu0 0.0
    %954 = vmatpush.msra.mxu0 0.0
    %955 = vmatpush.msra.mxu0 0.0
    %956 = vmatpush.msra.mxu0 0.0
    %957 = vmatpush.msra.mxu0 %v72
    %958 = vmatpush.msra.mxu0 %v71
    %959 = vmatpush.msra.mxu0 %v70
    %960 = vmatpush.msra.mxu0 %v69
    %961 = vmatmul.f32.gmra.mxu0 %v883
    %v962 = vpop.f32.mrf.mxu0
    %v963 = vadd.f32 0.0, %v962
    %964 = vdwg.mxu0
    %v966 = vsel %vm104, %v944, 0
    %968 = vmatpush.msra.mxu0 0.0
    %969 = vmatpush.msra.mxu0 0.0
    %970 = vmatpush.msra.mxu0 0.0
    %971 = vmatpush.msra.mxu0 0.0
    %972 = vmatpush.msra.mxu0 0.0
    %973 = vmatpush.msra.mxu0 0.0
    %974 = vmatpush.msra.mxu0 0.0
    %975 = vmatpush.msra.mxu0 0.0
    %976 = vmatpush.msra.mxu0 0.0
    %977 = vmatpush.msra.mxu0 0.0
    %978 = vmatpush.msra.mxu0 0.0
    %979 = vmatpush.msra.mxu0 0.0
    %980 = vmatpush.msra.mxu0 0.0
    %981 = vmatpush.msra.mxu0 0.0
    %982 = vmatpush.msra.mxu0 0.0
    %983 = vmatpush.msra.mxu0 %v110
    %984 = vmatmul.f32.gmra.mxu0 %v966
    %v985 = vpop.f32.mrf.mxu0
    %v986 = vadd.f32 %v963, %v985
    %987 = vdwg.mxu0
    %v988 = vadd.f32 %v986, %v133
    %v989 = vxor.u32 %v988, 2147483648
    %v990 = vmul.f32 %v989, 1.442695
    %v991 = vpow.pop %v990
    %v992 = vadd.f32 %v991, 1.0
    %v993 = vrcp.pop %v992
    %v994 = vmul.f32 %v992, %v993
    %v995 = vsub.f32 1.0, %v994
    %v996 = vmul.f32 %v993, %v995
    %v997 = vadd.f32 %v993, %v996
    %vm998 = vweird.f32 %v992
    %vm999 = vweird.f32 %v993
    %vm1000 = vmor %vm998, %vm999
    %v1001 = vsel %vm1000, %v993, %v997
    %v1002 = vand.u32 2147483647, %v992
    %vm1003 = vcmp.eq.f32.partialorder %v1002, 8.507059e+37
    %v1004 = vand.u32 %v992, 2147483648
    %v1005 = vor.u32 1.1754944e-38, %v1004
    %v1006 = vsel %vm1003, %v1005, %v1001
    %v1007 = vmul.f32 1.0, %v1006
    %v1008 = vtanh.pop %v988
    %v1009 = vmul.f32 %v1007, %v848
    %1011 = vrot.lane.b32.xlu0 %v1008, 64
    %v1012 = vpop.permute.xlu0 %1011
    %v1014 = vmul.f32 %v1007, %v1012
    %1016 = vrot.lane.b32.xlu0 %v1014, 32
    %v1017 = vpop.permute.xlu0 %1016
    %v1019 = vadd.f32 %v1009, %v1017
    %v1020 = vtanh.pop %v1019
    %1022 = vrot.lane.b32.xlu0 %v1020, 64
    %v1023 = vpop.permute.xlu0 %1022
    %v1025 = vmul.f32 %v1007, %v1023
    %1027 = vrot.lane.b32.xlu0 %v942, 32
    %v1028 = vpop.permute.xlu0 %1027
    %v1029 = vsel %vm80, %v1028, 0
    %1031 = vmatpush.msra.mxu0 0.0
    %1032 = vmatpush.msra.mxu0 0.0
    %1033 = vmatpush.msra.mxu0 0.0
    %1034 = vmatpush.msra.mxu0 0.0
    %1035 = vmatpush.msra.mxu0 0.0
    %1036 = vmatpush.msra.mxu0 0.0
    %1037 = vmatpush.msra.mxu0 0.0
    %1038 = vmatpush.msra.mxu0 0.0
    %1039 = vmatpush.msra.mxu0 0.0
    %1040 = vmatpush.msra.mxu0 0.0
    %1041 = vmatpush.msra.mxu0 0.0
    %1042 = vmatpush.msra.mxu0 0.0
    %1043 = vmatpush.msra.mxu0 %v76
    %1044 = vmatpush.msra.mxu0 %v75
    %1045 = vmatpush.msra.mxu0 %v74
    %1046 = vmatpush.msra.mxu0 %v73
    %1047 = vmatmul.f32.gmra.mxu0 %v1029
    %v1048 = vpop.f32.mrf.mxu0
    %v1049 = vadd.f32 0.0, %v1048
    %1050 = vdwg.mxu0
    %1052 = vrot.lane.b32.xlu0 %v1025, 32
    %v1053 = vpop.permute.xlu0 %1052
    %v1054 = vsel %vm80, %v1053, 0
    %1056 = vmatpush.msra.mxu0 0.0
    %1057 = vmatpush.msra.mxu0 0.0
    %1058 = vmatpush.msra.mxu0 0.0
    %1059 = vmatpush.msra.mxu0 0.0
    %1060 = vmatpush.msra.mxu0 0.0
    %1061 = vmatpush.msra.mxu0 0.0
    %1062 = vmatpush.msra.mxu0 0.0
    %1063 = vmatpush.msra.mxu0 0.0
    %1064 = vmatpush.msra.mxu0 0.0
    %1065 = vmatpush.msra.mxu0 0.0
    %1066 = vmatpush.msra.mxu0 0.0
    %1067 = vmatpush.msra.mxu0 0.0
    %1068 = vmatpush.msra.mxu0 %v68
    %1069 = vmatpush.msra.mxu0 %v67
    %1070 = vmatpush.msra.mxu0 %v66
    %1071 = vmatpush.msra.mxu0 %v65
    %1072 = vmatmul.f32.gmra.mxu0 %v1054
    %v1073 = vpop.f32.mrf.mxu0
    %v1074 = vadd.f32 %v1049, %v1073
    %1075 = vdwg.mxu0
    %v1076 = vadd.f32 %v1074, %v219
    %v1077 = vxor.u32 %v1076, 2147483648
    %v1078 = vmul.f32 %v1077, 1.442695
    %v1079 = vpow.pop %v1078
    %v1080 = vadd.f32 %v1079, 1.0
    %v1081 = vrcp.pop %v1080
    %v1082 = vmul.f32 %v1080, %v1081
    %v1083 = vsub.f32 1.0, %v1082
    %v1084 = vmul.f32 %v1081, %v1083
    %v1085 = vadd.f32 %v1081, %v1084
    %vm1086 = vweird.f32 %v1080
    %vm1087 = vweird.f32 %v1081
    %vm1088 = vmor %vm1086, %vm1087
    %v1089 = vsel %vm1088, %v1081, %v1085
    %v1090 = vand.u32 2147483647, %v1080
    %vm1091 = vcmp.eq.f32.partialorder %v1090, 8.507059e+37
    %v1092 = vand.u32 %v1080, 2147483648
    %v1093 = vor.u32 1.1754944e-38, %v1092
    %v1094 = vsel %vm1091, %v1093, %v1089
    %v1095 = vmul.f32 1.0, %v1094
    %v1096 = vtanh.pop %v1076
    %v1097 = vmul.f32 %v1095, %v936
    %1099 = vrot.lane.b32.xlu0 %v1096, 64
    %v1100 = vpop.permute.xlu0 %1099
    %v1102 = vmul.f32 %v1095, %v1100
    %1104 = vrot.lane.b32.xlu0 %v1102, 32
    %v1105 = vpop.permute.xlu0 %1104
    %v1107 = vadd.f32 %v1097, %v1105
    %v1108 = vtanh.pop %v1107
    %1110 = vrot.lane.b32.xlu0 %v1108, 64
    %v1111 = vpop.permute.xlu0 %1110
    %v1113 = vmul.f32 %v1095, %v1111
    %s1114 = scalar_lea.vmem %s0, 48
    %v1115 = vld [vmem:[%s1114] sm:$0xff]
    %1116 = vmatpush.msra.mxu0 0.0
    %1117 = vmatpush.msra.mxu0 0.0
    %1118 = vmatpush.msra.mxu0 0.0
    %1119 = vmatpush.msra.mxu0 0.0
    %1120 = vmatpush.msra.mxu0 0.0
    %1121 = vmatpush.msra.mxu0 0.0
    %1122 = vmatpush.msra.mxu0 0.0
    %1123 = vmatpush.msra.mxu0 0.0
    %1124 = vmatpush.msra.mxu0 0.0
    %1125 = vmatpush.msra.mxu0 0.0
    %1126 = vmatpush.msra.mxu0 0.0
    %1127 = vmatpush.msra.mxu0 0.0
    %1128 = vmatpush.msra.mxu0 %v72
    %1129 = vmatpush.msra.mxu0 %v71
    %1130 = vmatpush.msra.mxu0 %v70
    %1131 = vmatpush.msra.mxu0 %v69
    %1132 = vmatmul.f32.gmra.mxu0 %v1054
    %v1133 = vpop.f32.mrf.mxu0
    %v1134 = vadd.f32 0.0, %v1133
    %1135 = vdwg.mxu0
    %v1137 = vsel %vm104, %v1115, 0
    %1139 = vmatpush.msra.mxu0 0.0
    %1140 = vmatpush.msra.mxu0 0.0
    %1141 = vmatpush.msra.mxu0 0.0
    %1142 = vmatpush.msra.mxu0 0.0
    %1143 = vmatpush.msra.mxu0 0.0
    %1144 = vmatpush.msra.mxu0 0.0
    %1145 = vmatpush.msra.mxu0 0.0
    %1146 = vmatpush.msra.mxu0 0.0
    %1147 = vmatpush.msra.mxu0 0.0
    %1148 = vmatpush.msra.mxu0 0.0
    %1149 = vmatpush.msra.mxu0 0.0
    %1150 = vmatpush.msra.mxu0 0.0
    %1151 = vmatpush.msra.mxu0 0.0
    %1152 = vmatpush.msra.mxu0 0.0
    %1153 = vmatpush.msra.mxu0 0.0
    %1154 = vmatpush.msra.mxu0 %v110
    %1155 = vmatmul.f32.gmra.mxu0 %v1137
    %v1156 = vpop.f32.mrf.mxu0
    %v1157 = vadd.f32 %v1134, %v1156
    %1158 = vdwg.mxu0
    %v1159 = vadd.f32 %v1157, %v133
    %v1160 = vxor.u32 %v1159, 2147483648
    %v1161 = vmul.f32 %v1160, 1.442695
    %v1162 = vpow.pop %v1161
    %v1163 = vadd.f32 %v1162, 1.0
    %v1164 = vrcp.pop %v1163
    %v1165 = vmul.f32 %v1163, %v1164
    %v1166 = vsub.f32 1.0, %v1165
    %v1167 = vmul.f32 %v1164, %v1166
    %v1168 = vadd.f32 %v1164, %v1167
    %vm1169 = vweird.f32 %v1163
    %vm1170 = vweird.f32 %v1164
    %vm1171 = vmor %vm1169, %vm1170
    %v1172 = vsel %vm1171, %v1164, %v1168
    %v1173 = vand.u32 2147483647, %v1163
    %vm1174 = vcmp.eq.f32.partialorder %v1173, 8.507059e+37
    %v1175 = vand.u32 %v1163, 2147483648
    %v1176 = vor.u32 1.1754944e-38, %v1175
    %v1177 = vsel %vm1174, %v1176, %v1172
    %v1178 = vmul.f32 1.0, %v1177
    %v1179 = vtanh.pop %v1159
    %v1180 = vmul.f32 %v1178, %v1019
    %1182 = vrot.lane.b32.xlu0 %v1179, 64
    %v1183 = vpop.permute.xlu0 %1182
    %v1185 = vmul.f32 %v1178, %v1183
    %1187 = vrot.lane.b32.xlu0 %v1185, 32
    %v1188 = vpop.permute.xlu0 %1187
    %v1190 = vadd.f32 %v1180, %v1188
    %v1191 = vtanh.pop %v1190
    %1193 = vrot.lane.b32.xlu0 %v1191, 64
    %v1194 = vpop.permute.xlu0 %1193
    %v1196 = vmul.f32 %v1178, %v1194
    %1198 = vrot.lane.b32.xlu0 %v1113, 32
    %v1199 = vpop.permute.xlu0 %1198
    %v1200 = vsel %vm80, %v1199, 0
    %1202 = vmatpush.msra.mxu0 0.0
    %1203 = vmatpush.msra.mxu0 0.0
    %1204 = vmatpush.msra.mxu0 0.0
    %1205 = vmatpush.msra.mxu0 0.0
    %1206 = vmatpush.msra.mxu0 0.0
    %1207 = vmatpush.msra.mxu0 0.0
    %1208 = vmatpush.msra.mxu0 0.0
    %1209 = vmatpush.msra.mxu0 0.0
    %1210 = vmatpush.msra.mxu0 0.0
    %1211 = vmatpush.msra.mxu0 0.0
    %1212 = vmatpush.msra.mxu0 0.0
    %1213 = vmatpush.msra.mxu0 0.0
    %1214 = vmatpush.msra.mxu0 %v76
    %1215 = vmatpush.msra.mxu0 %v75
    %1216 = vmatpush.msra.mxu0 %v74
    %1217 = vmatpush.msra.mxu0 %v73
    %1218 = vmatmul.f32.gmra.mxu0 %v1200
    %v1219 = vpop.f32.mrf.mxu0
    %v1220 = vadd.f32 0.0, %v1219
    %1221 = vdwg.mxu0
    %1223 = vrot.lane.b32.xlu0 %v1196, 32
    %v1224 = vpop.permute.xlu0 %1223
    %v1225 = vsel %vm80, %v1224, 0
    %1227 = vmatpush.msra.mxu0 0.0
    %1228 = vmatpush.msra.mxu0 0.0
    %1229 = vmatpush.msra.mxu0 0.0
    %1230 = vmatpush.msra.mxu0 0.0
    %1231 = vmatpush.msra.mxu0 0.0
    %1232 = vmatpush.msra.mxu0 0.0
    %1233 = vmatpush.msra.mxu0 0.0
    %1234 = vmatpush.msra.mxu0 0.0
    %1235 = vmatpush.msra.mxu0 0.0
    %1236 = vmatpush.msra.mxu0 0.0
    %1237 = vmatpush.msra.mxu0 0.0
    %1238 = vmatpush.msra.mxu0 0.0
    %1239 = vmatpush.msra.mxu0 %v68
    %1240 = vmatpush.msra.mxu0 %v67
    %1241 = vmatpush.msra.mxu0 %v66
    %1242 = vmatpush.msra.mxu0 %v65
    %1243 = vmatmul.f32.gmra.mxu0 %v1225
    %v1244 = vpop.f32.mrf.mxu0
    %v1245 = vadd.f32 %v1220, %v1244
    %1246 = vdwg.mxu0
    %v1247 = vadd.f32 %v1245, %v219
    %v1248 = vxor.u32 %v1247, 2147483648
    %v1249 = vmul.f32 %v1248, 1.442695
    %v1250 = vpow.pop %v1249
    %v1251 = vadd.f32 %v1250, 1.0
    %v1252 = vrcp.pop %v1251
    %v1253 = vmul.f32 %v1251, %v1252
    %v1254 = vsub.f32 1.0, %v1253
    %v1255 = vmul.f32 %v1252, %v1254
    %v1256 = vadd.f32 %v1252, %v1255
    %vm1257 = vweird.f32 %v1251
    %vm1258 = vweird.f32 %v1252
    %vm1259 = vmor %vm1257, %vm1258
    %v1260 = vsel %vm1259, %v1252, %v1256
    %v1261 = vand.u32 2147483647, %v1251
    %vm1262 = vcmp.eq.f32.partialorder %v1261, 8.507059e+37
    %v1263 = vand.u32 %v1251, 2147483648
    %v1264 = vor.u32 1.1754944e-38, %v1263
    %v1265 = vsel %vm1262, %v1264, %v1260
    %v1266 = vmul.f32 1.0, %v1265
    %v1267 = vtanh.pop %v1247
    %v1268 = vmul.f32 %v1266, %v1107
    %1270 = vrot.lane.b32.xlu0 %v1267, 64
    %v1271 = vpop.permute.xlu0 %1270
    %v1273 = vmul.f32 %v1266, %v1271
    %1275 = vrot.lane.b32.xlu0 %v1273, 32
    %v1276 = vpop.permute.xlu0 %1275
    %v1278 = vadd.f32 %v1268, %v1276
    %v1279 = vtanh.pop %v1278
    %1281 = vrot.lane.b32.xlu0 %v1279, 64
    %v1282 = vpop.permute.xlu0 %1281
    %v1284 = vmul.f32 %v1266, %v1282
    %s1285 = scalar_lea.vmem %s0, 56
    %v1286 = vld [vmem:[%s1285] sm:$0xff]
    %1287 = vmatpush.msra.mxu0 0.0
    %1288 = vmatpush.msra.mxu0 0.0
    %1289 = vmatpush.msra.mxu0 0.0
    %1290 = vmatpush.msra.mxu0 0.0
    %1291 = vmatpush.msra.mxu0 0.0
    %1292 = vmatpush.msra.mxu0 0.0
    %1293 = vmatpush.msra.mxu0 0.0
    %1294 = vmatpush.msra.mxu0 0.0
    %1295 = vmatpush.msra.mxu0 0.0
    %1296 = vmatpush.msra.mxu0 0.0
    %1297 = vmatpush.msra.mxu0 0.0
    %1298 = vmatpush.msra.mxu0 0.0
    %1299 = vmatpush.msra.mxu0 %v72
    %1300 = vmatpush.msra.mxu0 %v71
    %1301 = vmatpush.msra.mxu0 %v70
    %1302 = vmatpush.msra.mxu0 %v69
    %1303 = vmatmul.f32.gmra.mxu0 %v1225
    %v1304 = vpop.f32.mrf.mxu0
    %v1305 = vadd.f32 0.0, %v1304
    %1306 = vdwg.mxu0
    %v1308 = vsel %vm104, %v1286, 0
    %1310 = vmatpush.msra.mxu0 0.0
    %1311 = vmatpush.msra.mxu0 0.0
    %1312 = vmatpush.msra.mxu0 0.0
    %1313 = vmatpush.msra.mxu0 0.0
    %1314 = vmatpush.msra.mxu0 0.0
    %1315 = vmatpush.msra.mxu0 0.0
    %1316 = vmatpush.msra.mxu0 0.0
    %1317 = vmatpush.msra.mxu0 0.0
    %1318 = vmatpush.msra.mxu0 0.0
    %1319 = vmatpush.msra.mxu0 0.0
    %1320 = vmatpush.msra.mxu0 0.0
    %1321 = vmatpush.msra.mxu0 0.0
    %1322 = vmatpush.msra.mxu0 0.0
    %1323 = vmatpush.msra.mxu0 0.0
    %1324 = vmatpush.msra.mxu0 0.0
    %1325 = vmatpush.msra.mxu0 %v110
    %1326 = vmatmul.f32.gmra.mxu0 %v1308
    %v1327 = vpop.f32.mrf.mxu0
    %v1328 = vadd.f32 %v1305, %v1327
    %1329 = vdwg.mxu0
    %v1330 = vadd.f32 %v1328, %v133
    %v1331 = vxor.u32 %v1330, 2147483648
    %v1332 = vmul.f32 %v1331, 1.442695
    %v1333 = vpow.pop %v1332
    %v1334 = vadd.f32 %v1333, 1.0
    %v1335 = vrcp.pop %v1334
    %v1336 = vmul.f32 %v1334, %v1335
    %v1337 = vsub.f32 1.0, %v1336
    %v1338 = vmul.f32 %v1335, %v1337
    %v1339 = vadd.f32 %v1335, %v1338
    %vm1340 = vweird.f32 %v1334
    %vm1341 = vweird.f32 %v1335
    %vm1342 = vmor %vm1340, %vm1341
    %v1343 = vsel %vm1342, %v1335, %v1339
    %v1344 = vand.u32 2147483647, %v1334
    %vm1345 = vcmp.eq.f32.partialorder %v1344, 8.507059e+37
    %v1346 = vand.u32 %v1334, 2147483648
    %v1347 = vor.u32 1.1754944e-38, %v1346
    %v1348 = vsel %vm1345, %v1347, %v1343
    %v1349 = vmul.f32 1.0, %v1348
    %v1350 = vtanh.pop %v1330
    %v1351 = vmul.f32 %v1349, %v1190
    %1353 = vrot.lane.b32.xlu0 %v1350, 64
    %v1354 = vpop.permute.xlu0 %1353
    %v1356 = vmul.f32 %v1349, %v1354
    %1358 = vrot.lane.b32.xlu0 %v1356, 32
    %v1359 = vpop.permute.xlu0 %1358
    %v1361 = vadd.f32 %v1351, %v1359
    %v1362 = vtanh.pop %v1361
    %1364 = vrot.lane.b32.xlu0 %v1362, 64
    %v1365 = vpop.permute.xlu0 %1364
    %v1367 = vmul.f32 %v1349, %v1365
    %1369 = vrot.lane.b32.xlu0 %v1284, 32
    %v1370 = vpop.permute.xlu0 %1369
    %v1371 = vsel %vm80, %v1370, 0
    %1373 = vmatpush.msra.mxu0 0.0
    %1374 = vmatpush.msra.mxu0 0.0
    %1375 = vmatpush.msra.mxu0 0.0
    %1376 = vmatpush.msra.mxu0 0.0
    %1377 = vmatpush.msra.mxu0 0.0
    %1378 = vmatpush.msra.mxu0 0.0
    %1379 = vmatpush.msra.mxu0 0.0
    %1380 = vmatpush.msra.mxu0 0.0
    %1381 = vmatpush.msra.mxu0 0.0
    %1382 = vmatpush.msra.mxu0 0.0
    %1383 = vmatpush.msra.mxu0 0.0
    %1384 = vmatpush.msra.mxu0 0.0
    %1385 = vmatpush.msra.mxu0 %v76
    %1386 = vmatpush.msra.mxu0 %v75
    %1387 = vmatpush.msra.mxu0 %v74
    %1388 = vmatpush.msra.mxu0 %v73
    %1389 = vmatmul.f32.gmra.mxu0 %v1371
    %v1390 = vpop.f32.mrf.mxu0
    %v1391 = vadd.f32 0.0, %v1390
    %1392 = vdwg.mxu0
    %1394 = vrot.lane.b32.xlu0 %v1367, 32
    %v1395 = vpop.permute.xlu0 %1394
    %v1396 = vsel %vm80, %v1395, 0
    %1398 = vmatpush.msra.mxu0 0.0
    %1399 = vmatpush.msra.mxu0 0.0
    %1400 = vmatpush.msra.mxu0 0.0
    %1401 = vmatpush.msra.mxu0 0.0
    %1402 = vmatpush.msra.mxu0 0.0
    %1403 = vmatpush.msra.mxu0 0.0
    %1404 = vmatpush.msra.mxu0 0.0
    %1405 = vmatpush.msra.mxu0 0.0
    %1406 = vmatpush.msra.mxu0 0.0
    %1407 = vmatpush.msra.mxu0 0.0
    %1408 = vmatpush.msra.mxu0 0.0
    %1409 = vmatpush.msra.mxu0 0.0
    %1410 = vmatpush.msra.mxu0 %v68
    %1411 = vmatpush.msra.mxu0 %v67
    %1412 = vmatpush.msra.mxu0 %v66
    %1413 = vmatpush.msra.mxu0 %v65
    %1414 = vmatmul.f32.gmra.mxu0 %v1396
    %v1415 = vpop.f32.mrf.mxu0
    %v1416 = vadd.f32 %v1391, %v1415
    %1417 = vdwg.mxu0
    %v1418 = vadd.f32 %v1416, %v219
    %v1419 = vxor.u32 %v1418, 2147483648
    %v1420 = vmul.f32 %v1419, 1.442695
    %v1421 = vpow.pop %v1420
    %v1422 = vadd.f32 %v1421, 1.0
    %v1423 = vrcp.pop %v1422
    %v1424 = vmul.f32 %v1422, %v1423
    %v1425 = vsub.f32 1.0, %v1424
    %v1426 = vmul.f32 %v1423, %v1425
    %v1427 = vadd.f32 %v1423, %v1426
    %vm1428 = vweird.f32 %v1422
    %vm1429 = vweird.f32 %v1423
    %vm1430 = vmor %vm1428, %vm1429
    %v1431 = vsel %vm1430, %v1423, %v1427
    %v1432 = vand.u32 2147483647, %v1422
    %vm1433 = vcmp.eq.f32.partialorder %v1432, 8.507059e+37
    %v1434 = vand.u32 %v1422, 2147483648
    %v1435 = vor.u32 1.1754944e-38, %v1434
    %v1436 = vsel %vm1433, %v1435, %v1431
    %v1437 = vmul.f32 1.0, %v1436
    %v1438 = vtanh.pop %v1418
    %v1439 = vmul.f32 %v1437, %v1278
    %1441 = vrot.lane.b32.xlu0 %v1438, 64
    %v1442 = vpop.permute.xlu0 %1441
    %v1444 = vmul.f32 %v1437, %v1442
    %1446 = vrot.lane.b32.xlu0 %v1444, 32
    %v1447 = vpop.permute.xlu0 %1446
    %v1449 = vadd.f32 %v1439, %v1447
    %v1450 = vtanh.pop %v1449
    %1452 = vrot.lane.b32.xlu0 %v1450, 64
    %v1453 = vpop.permute.xlu0 %1452
    %v1455 = vmul.f32 %v1437, %v1453
    %v1456 = vld [vmem:[%s7] sm:$0xff]
    %v1457 = vld [vmem:[%s7 + $0x8] sm:$0xff]
    %v1458 = vld [vmem:[%s7 + $0x10] sm:$0xff]
    %v1459 = vld [vmem:[%s7 + $0x18] sm:$0xff]
    %v1460 = vld [vmem:[%s7 + $0x20] sm:$0xff]
    %v1461 = vld [vmem:[%s7 + $0x28] sm:$0xff]
    %v1462 = vld [vmem:[%s7 + $0x30] sm:$0xff]
    %v1463 = vld [vmem:[%s7 + $0x38] sm:$0xff]
    %1465 = vrot.lane.b32.xlu0 %v1455, 32
    %v1466 = vpop.permute.xlu0 %1465
    %v1468 = vmul.f32 %v1456, %v1466
    %v1469 = vmul.f32 %v1457, %v1466
    %v1470 = vmul.f32 %v1458, %v1466
    %v1471 = vmul.f32 %v1459, %v1466
    %v1472 = vmul.f32 %v1460, %v1466
    %v1473 = vmul.f32 %v1461, %v1466
    %v1474 = vmul.f32 %v1462, %v1466
    %v1475 = vmul.f32 %v1463, %v1466
    %v1476 = vsel %vm80, %v1468, 0.0
    %1477 = vadd.xlane.f32.xlu0 %v1476
    %v1478 = vpop.xlane.xlu0 %1477
    %v1479 = vsel %vm80, %v1469, 0.0
    %1480 = vadd.xlane.f32.xlu0 %v1479
    %v1481 = vpop.xlane.xlu0 %1480
    %v1482 = vsel %vm80, %v1470, 0.0
    %1483 = vadd.xlane.f32.xlu0 %v1482
    %v1484 = vpop.xlane.xlu0 %1483
    %v1485 = vsel %vm80, %v1471, 0.0
    %1486 = vadd.xlane.f32.xlu0 %v1485
    %v1487 = vpop.xlane.xlu0 %1486
    %v1488 = vsel %vm80, %v1472, 0.0
    %1489 = vadd.xlane.f32.xlu0 %v1488
    %v1490 = vpop.xlane.xlu0 %1489
    %v1491 = vsel %vm80, %v1473, 0.0
    %1492 = vadd.xlane.f32.xlu0 %v1491
    %v1493 = vpop.xlane.xlu0 %1492
    %v1494 = vsel %vm80, %v1474, 0.0
    %1495 = vadd.xlane.f32.xlu0 %v1494
    %v1496 = vpop.xlane.xlu0 %1495
    %v1497 = vsel %vm80, %v1475, 0.0
    %1498 = vadd.xlane.f32.xlu0 %v1497
    %v1499 = vpop.xlane.xlu0 %1498
    %v1508 = vlaneseq
    %v1509 = vand.u32 %v1508, 127
    %v1510 = vperm.slane %v1478, %v1509
    %v1511 = vperm.slane %v1481, %v1509
    %v1512 = vperm.slane %v1484, %v1509
    %v1513 = vperm.slane %v1487, %v1509
    %v1514 = vperm.slane %v1490, %v1509
    %v1515 = vperm.slane %v1493, %v1509
    %v1516 = vperm.slane %v1496, %v1509
    %v1517 = vperm.slane %v1499, %v1509
    %vm1518 = vcmask 1041409
    %v1519 = vsel %vm1518, %v1511, %v1510
    %vm1520 = vcmask 1042434
    %v1521 = vsel %vm1520, %v1512, %v1519
    %vm1522 = vcmask 1043459
    %v1523 = vsel %vm1522, %v1513, %v1521
    %vm1524 = vcmask 1044484
    %v1525 = vsel %vm1524, %v1514, %v1523
    %vm1526 = vcmask 1045509
    %v1527 = vsel %vm1526, %v1515, %v1525
    %vm1528 = vcmask 1046534
    %v1529 = vsel %vm1528, %v1516, %v1527
    %vm1530 = vcmask 1047559
    %v1531 = vsel %vm1530, %v1517, %v1529
    %vm1533 = vcmask 64512
    %v1534 = vsel %vm1533, %v1531, 0.0
    %1535 = vadd.xlane.f32.xlu0 %v1534
    %v1536 = vpop.xlane.xlu0 %1535
    %v1537 = vld [vmem:[%s8] sm:$0xff]
    %v1538 = vadd.f32 %v1536, %v1537
    %vm1539 = vcmask 7168
    %1540 = vst.msk [vmem:[%s9] sm:$0xff] %vm1539, %v1538
    // Predicated region
    $region46: #{tpu_custom_call.1} parent=1 // pred_check
      _
    $region47: #{tpu_custom_call.1} parent=1 // pred_check_branch
      %1542 = sbr.rel (0) target = $region49
    $region48: #{tpu_custom_call.1} parent=1 // pred_region
      _
    $region49: #{tpu_custom_call.1} parent=1 // pred_fallthru
      _
    // Predicated region
    $region50: #{tpu_custom_call.1} parent=1 // pred_check
      _
    $region51: #{tpu_custom_call.1} parent=1 // pred_check_branch
      %1544 = sbr.rel (0) target = $region53
    $region52: #{tpu_custom_call.1} parent=1 // pred_region
      _
    $region53: #{tpu_custom_call.1} parent=1 // pred_fallthru
      _
    %1545 = vsyncpa [#allocation3], 1
    %1546 = vsyncpa [#allocation5], 1

</llo_original>
